<compile_context>
chip_gen: v6e
topology: v6e:2x2x1
jax: 0.10.0
libtpu: 0.0.40
codegen_flags: <defaults>
</compile_context>

<pallas_src>
import jax
import jax.numpy as jnp
from jax import lax
from jax.experimental import pallas as pl
from jax.experimental.pallas import tpu as pltpu


def _relu(v):
    return jnp.maximum(v, 0.0)


def _irnn_kernel(xv_ref, xh_ref, pv_ref, ph_ref,
                 up_ref, down_ref, left_ref, right_ref):
    # xv_ref / up_ref / down_ref : (H, Lv_blk)   (lane = b*W*C + w*C + c)
    # xh_ref / left_ref / right_ref : (W, Lh_blk) (lane = b*H*C + h*C + c)
    # pv_ref : (4, Lv_blk) rows = [w_up, w_down, b_up, b_down] (pre-broadcast)
    # ph_ref : (4, Lh_blk) rows = [w_left, w_right, b_left, b_right]
    H = xv_ref.shape[0]
    W = xh_ref.shape[0]

    w_up = pv_ref[pl.ds(0, 1), :]
    w_dn = pv_ref[pl.ds(1, 1), :]
    b_up = pv_ref[pl.ds(2, 1), :]
    b_dn = pv_ref[pl.ds(3, 1), :]
    w_lt = ph_ref[pl.ds(0, 1), :]
    w_rt = ph_ref[pl.ds(1, 1), :]
    b_lt = ph_ref[pl.ds(2, 1), :]
    b_rt = ph_ref[pl.ds(3, 1), :]

    # Only the boundary row each sweep never writes is zeroed (not the full
    # output block) -- the recurrence overwrites every other row.
    up_ref[pl.ds(H - 1, 1), :] = jnp.zeros((1, up_ref.shape[1]), up_ref.dtype)
    down_ref[pl.ds(0, 1), :] = jnp.zeros((1, down_ref.shape[1]), down_ref.dtype)
    left_ref[pl.ds(W - 1, 1), :] = jnp.zeros((1, left_ref.shape[1]), left_ref.dtype)
    right_ref[pl.ds(0, 1), :] = jnp.zeros((1, right_ref.shape[1]), right_ref.dtype)

    prev_up0 = _relu(xv_ref[pl.ds(H - 1, 1), :])
    prev_dn0 = _relu(xv_ref[pl.ds(0, 1), :])
    prev_lt0 = _relu(xh_ref[pl.ds(W - 1, 1), :])
    prev_rt0 = _relu(xh_ref[pl.ds(0, 1), :])

    def step_v(i, p_up, p_dn):
        hu = H - 1 - i          # up writes rows H-2 .. 0
        hd = i                  # down writes rows 1 .. H-1
        p_up = _relu(p_up * w_up + b_up + xv_ref[pl.ds(hu, 1), :])
        p_dn = _relu(p_dn * w_dn + b_dn + xv_ref[pl.ds(hd, 1), :])
        up_ref[pl.ds(hu, 1), :] = p_up
        down_ref[pl.ds(hd, 1), :] = p_dn
        return p_up, p_dn

    def step_h(i, p_lt, p_rt):
        wl = W - 1 - i          # left writes cols W-2 .. 0
        wr = i                  # right writes cols 1 .. W-1
        p_lt = _relu(p_lt * w_lt + b_lt + xh_ref[pl.ds(wl, 1), :])
        p_rt = _relu(p_rt * w_rt + b_rt + xh_ref[pl.ds(wr, 1), :])
        left_ref[pl.ds(wl, 1), :] = p_lt
        right_ref[pl.ds(wr, 1), :] = p_rt
        return p_lt, p_rt

    def _unroll(trip):
        return True if trip <= 32 else 8

    if H == W:
        # All four independent recurrence chains share one loop: 4-way ILP.
        def body(i, carry):
            p_up, p_dn, p_lt, p_rt = carry
            p_up, p_dn = step_v(i, p_up, p_dn)
            p_lt, p_rt = step_h(i, p_lt, p_rt)
            return p_up, p_dn, p_lt, p_rt

        lax.fori_loop(1, H, body,
                      (prev_up0, prev_dn0, prev_lt0, prev_rt0),
                      unroll=_unroll(H - 1))
    else:
        def body_v(i, carry):
            return step_v(i, *carry)

        def body_h(i, carry):
            return step_h(i, *carry)

        lax.fori_loop(1, H, body_v, (prev_up0, prev_dn0), unroll=_unroll(H - 1))
        lax.fori_loop(1, W, body_h, (prev_lt0, prev_rt0), unroll=_unroll(W - 1))


def spacial_irnn_forward(x_nchw, w_up, w_right, w_down, w_left,
                         b_up, b_right, b_down, b_left):
    """Returns (output_up, output_right, output_down, output_left) in NCHW."""
    B, C, H, W = x_nchw.shape
    x = x_nchw.astype(jnp.float32)

    Lv = B * W * C  # lane axis for the vertical (up/down) sweeps
    Lh = B * H * C  # lane axis for the horizontal (left/right) sweeps

    # Scan-major, lane-dense layouts.
    x_v = jnp.transpose(x, (2, 0, 3, 1)).reshape(H, Lv)   # (H, B*W*C)
    x_h = jnp.transpose(x, (3, 0, 2, 1)).reshape(W, Lh)   # (W, B*H*C)

    def cvec(p):
        return jnp.asarray(p, jnp.float32).reshape(C)

    def bc_v(p):  # (C,) -> (B*W*C,), matching x_v's lane order (b, w, c)
        return jnp.broadcast_to(cvec(p), (B, W, C)).reshape(Lv)

    def bc_h(p):  # (C,) -> (B*H*C,), matching x_h's lane order (b, h, c)
        return jnp.broadcast_to(cvec(p), (B, H, C)).reshape(Lh)

    params_v = jnp.stack([bc_v(w_up), bc_v(w_down), bc_v(b_up), bc_v(b_down)])
    params_h = jnp.stack([bc_h(w_left), bc_h(w_right), bc_h(b_left), bc_h(b_right)])

    # Optional parallel grid over independent lane chunks (128-aligned); with
    # realistic C/H/W this splits work across v7x's two TensorCores, here it
    # degenerates to a single block.
    G = 1
    for cand in range(8, 1, -1):
        if Lv % (128 * cand) == 0 and Lh % (128 * cand) == 0:
            G = cand
            break
    lv_blk = Lv // G
    lh_blk = Lh // G

    xv_spec = pl.BlockSpec((H, lv_blk), lambda g: (0, g))
    xh_spec = pl.BlockSpec((W, lh_blk), lambda g: (0, g))
    pv_spec = pl.BlockSpec((4, lv_blk), lambda g: (0, g))
    ph_spec = pl.BlockSpec((4, lh_blk), lambda g: (0, g))

    # (1 xv + 1 xh + 2 param + 4 output) blocks, double-buffered by the
    # pipeline; give the compiler an explicit (clamped) VMEM budget.
    block_bytes = 4 * (3 * H * lv_blk + 3 * W * lh_blk + 4 * (lv_blk + lh_blk))
    vmem_limit = int(min(max(2 * block_bytes + (2 << 20), 32 << 20), 60 << 20))
    # TODO(synk): if the double-buffered working set ever exceeds ~60 MiB
    # (v7x has 64 MiB physical VMEM), additionally tile H / W.

    out_up, out_down, out_left, out_right = pl.pallas_call(
        _irnn_kernel,
        out_shape=(
            jax.ShapeDtypeStruct((H, Lv), jnp.float32),
            jax.ShapeDtypeStruct((H, Lv), jnp.float32),
            jax.ShapeDtypeStruct((W, Lh), jnp.float32),
            jax.ShapeDtypeStruct((W, Lh), jnp.float32),
        ),
        grid_spec=pltpu.PrefetchScalarGridSpec(
            num_scalar_prefetch=0,
            grid=(G,),
            in_specs=[xv_spec, xh_spec, pv_spec, ph_spec],
            out_specs=[xv_spec, xv_spec, xh_spec, xh_spec],
        ),
        compiler_params=pltpu.CompilerParams(
            dimension_semantics=("parallel",),
            vmem_limit_bytes=vmem_limit,
        ),
    )(x_v, x_h, params_v, params_h)

    # Back to NCHW.
    up = jnp.transpose(out_up.reshape(H, B, W, C), (1, 3, 0, 2))
    down = jnp.transpose(out_down.reshape(H, B, W, C), (1, 3, 0, 2))
    left = jnp.transpose(out_left.reshape(W, B, H, C), (1, 3, 2, 0))
    right = jnp.transpose(out_right.reshape(W, B, H, C), (1, 3, 2, 0))
    return up, right, down, left


# ---------------- pure-JAX reference (port of the PyTorch forward) -----------
def spacial_irnn_ref(x, w_up, w_right, w_down, w_left,
                     b_up, b_right, b_down, b_left):
    B, C, H, W = x.shape
    relu = lambda v: jnp.maximum(v, 0.0)
    r = lambda p: jnp.asarray(p, jnp.float32).reshape(1, C, 1)

    wu, wr, wd, wl = r(w_up), r(w_right), r(w_down), r(w_left)
    bu, br, bd, bl = r(b_up), r(b_right), r(b_down), r(b_left)

    # left
    cols = [None] * W
    cols[W - 1] = jnp.zeros((B, C, H), jnp.float32)
    prev = relu(x[:, :, :, W - 1])
    for w in range(W - 2, -1, -1):
        prev = relu(prev * wl + bl + x[:, :, :, w])
        cols[w] = prev
    out_left = jnp.stack(cols, axis=-1)

    # right
    cols = [None] * W
    cols[0] = jnp.zeros((B, C, H), jnp.float32)
    prev = relu(x[:, :, :, 0])
    for w in range(1, W):
        prev = relu(prev * wr + br + x[:, :, :, w])
        cols[w] = prev
    out_right = jnp.stack(cols, axis=-1)

    # up
    rows = [None] * H
    rows[H - 1] = jnp.zeros((B, C, W), jnp.float32)
    prev = relu(x[:, :, H - 1, :])
    for h in range(H - 2, -1, -1):
        prev = relu(prev * wu + bu + x[:, :, h, :])
        rows[h] = prev
    out_up = jnp.stack(rows, axis=-2)

    # down
    rows = [None] * H
    rows[0] = jnp.zeros((B, C, W), jnp.float32)
    prev = relu(x[:, :, 0, :])
    for h in range(1, H):
        prev = relu(prev * wd + bd + x[:, :, h, :])
        rows[h] = prev
    out_down = jnp.stack(rows, axis=-2)

    return out_up, out_right, out_down, out_left


if __name__ == "__main__":
    def run_case(key, B, C, H, W, alpha=1.0):
        kx, kbu, kbr, kbd, kbl = jax.random.split(key, 5)
        x = jax.random.normal(kx, (B, C, H, W), dtype=jnp.float32)

        # Conv2d(in, in, k=1, groups=in) weights: (C,1,1,1) filled with alpha.
        w_up = jnp.full((C, 1, 1, 1), alpha, jnp.float32)
        w_right = jnp.full((C, 1, 1, 1), alpha, jnp.float32)
        w_down = jnp.full((C, 1, 1, 1), alpha, jnp.float32)
        w_left = jnp.full((C, 1, 1, 1), alpha, jnp.float32)

        # Conv2d bias init: uniform(-1/sqrt(fan_in), +1/sqrt(fan_in)); fan_in=1.
        b_up = jax.random.uniform(kbu, (C,), jnp.float32, -1.0, 1.0)
        b_right = jax.random.uniform(kbr, (C,), jnp.float32, -1.0, 1.0)
        b_down = jax.random.uniform(kbd, (C,), jnp.float32, -1.0, 1.0)
        b_left = jax.random.uniform(kbl, (C,), jnp.float32, -1.0, 1.0)

        outs = spacial_irnn_forward(x, w_up, w_right, w_down, w_left,
                                    b_up, b_right, b_down, b_left)
        outs = jax.block_until_ready(outs)

        refs = spacial_irnn_ref(x, w_up, w_right, w_down, w_left,
                                b_up, b_right, b_down, b_left)

        for o, r, name in zip(outs, refs, ("up", "right", "down", "left")):
            assert o.shape == (B, C, H, W), (name, o.shape)
            assert jnp.allclose(o, r, atol=1e-5, rtol=1e-5), \
                f"mismatch in {name} for shape {(B, C, H, W)}"

    key = jax.random.PRNGKey(0)
    k1, k2 = jax.random.split(key)
    run_case(k1, 2, 4, 16, 16)      # square: fully fused 4-chain loop
    run_case(k2, 2, 4, 12, 8)       # non-square: separate fused H / W loops
    print("KERNEL_OK")
</pallas_src>

<mosaic_0001>
module attributes {stable_mosaic.version = 11 : i64} {
  func.func @_irnn_kernel(%arg0: i32, %arg1: memref<16x128xf32, #tpu.memory_space<vmem>>, %arg2: memref<16x128xf32, #tpu.memory_space<vmem>>, %arg3: memref<4x128xf32, #tpu.memory_space<vmem>>, %arg4: memref<4x128xf32, #tpu.memory_space<vmem>>, %arg5: memref<16x128xf32, #tpu.memory_space<vmem>>, %arg6: memref<16x128xf32, #tpu.memory_space<vmem>>, %arg7: memref<16x128xf32, #tpu.memory_space<vmem>>, %arg8: memref<16x128xf32, #tpu.memory_space<vmem>>) attributes {dimension_semantics = [#tpu.dimension_semantics<parallel>], iteration_bounds = array<i64: 1>, scalar_prefetch = 0 : i64, scratch_operands = 0 : i64, tpu.core_type = #tpu.core_type<tc>, window_params = [{transform_indices = @transform_0, window_bounds = array<i64: 16, 128>}, {transform_indices = @transform_1, window_bounds = array<i64: 16, 128>}, {transform_indices = @transform_2, window_bounds = array<i64: 4, 128>}, {transform_indices = @transform_3, window_bounds = array<i64: 4, 128>}, {transform_indices = @transform_4, window_bounds = array<i64: 16, 128>}, {transform_indices = @transform_5, window_bounds = array<i64: 16, 128>}, {transform_indices = @transform_6, window_bounds = array<i64: 16, 128>}, {transform_indices = @transform_7, window_bounds = array<i64: 16, 128>}]} {
    %c0 = arith.constant 0 : index
    %c0_0 = arith.constant 0 : index
    %0 = vector.load %arg3[%c0, %c0_0] : memref<4x128xf32, #tpu.memory_space<vmem>>, vector<1x128xf32>
    %c1 = arith.constant 1 : index
    %c0_1 = arith.constant 0 : index
    %1 = vector.load %arg3[%c1, %c0_1] : memref<4x128xf32, #tpu.memory_space<vmem>>, vector<1x128xf32>
    %c2 = arith.constant 2 : index
    %c0_2 = arith.constant 0 : index
    %2 = vector.load %arg3[%c2, %c0_2] : memref<4x128xf32, #tpu.memory_space<vmem>>, vector<1x128xf32>
    %c3 = arith.constant 3 : index
    %c0_3 = arith.constant 0 : index
    %3 = vector.load %arg3[%c3, %c0_3] : memref<4x128xf32, #tpu.memory_space<vmem>>, vector<1x128xf32>
    %c0_4 = arith.constant 0 : index
    %c0_5 = arith.constant 0 : index
    %4 = vector.load %arg4[%c0_4, %c0_5] : memref<4x128xf32, #tpu.memory_space<vmem>>, vector<1x128xf32>
    %c1_6 = arith.constant 1 : index
    %c0_7 = arith.constant 0 : index
    %5 = vector.load %arg4[%c1_6, %c0_7] : memref<4x128xf32, #tpu.memory_space<vmem>>, vector<1x128xf32>
    %c2_8 = arith.constant 2 : index
    %c0_9 = arith.constant 0 : index
    %6 = vector.load %arg4[%c2_8, %c0_9] : memref<4x128xf32, #tpu.memory_space<vmem>>, vector<1x128xf32>
    %c3_10 = arith.constant 3 : index
    %c0_11 = arith.constant 0 : index
    %7 = vector.load %arg4[%c3_10, %c0_11] : memref<4x128xf32, #tpu.memory_space<vmem>>, vector<1x128xf32>
    %cst = arith.constant 0.000000e+00 : f32
    %8 = vector.broadcast %cst : f32 to vector<1x128xf32>
    %c15 = arith.constant 15 : index
    %c0_12 = arith.constant 0 : index
    %9 = vector.load %arg5[%c15, %c0_12] : memref<16x128xf32, #tpu.memory_space<vmem>>, vector<1x128xf32>
    tpu.vector_store %arg5[%c15, %c0_12], %8 {strides = array<i32>} : memref<16x128xf32, #tpu.memory_space<vmem>>, vector<1x128xf32>,
    %cst_13 = arith.constant 0.000000e+00 : f32
    %10 = vector.broadcast %cst_13 : f32 to vector<1x128xf32>
    %c0_14 = arith.constant 0 : index
    %c0_15 = arith.constant 0 : index
    %11 = vector.load %arg6[%c0_14, %c0_15] : memref<16x128xf32, #tpu.memory_space<vmem>>, vector<1x128xf32>
    tpu.vector_store %arg6[%c0_14, %c0_15], %10 {strides = array<i32>} : memref<16x128xf32, #tpu.memory_space<vmem>>, vector<1x128xf32>,
    %cst_16 = arith.constant 0.000000e+00 : f32
    %12 = vector.broadcast %cst_16 : f32 to vector<1x128xf32>
    %c15_17 = arith.constant 15 : index
    %c0_18 = arith.constant 0 : index
    %13 = vector.load %arg7[%c15_17, %c0_18] : memref<16x128xf32, #tpu.memory_space<vmem>>, vector<1x128xf32>
    tpu.vector_store %arg7[%c15_17, %c0_18], %12 {strides = array<i32>} : memref<16x128xf32, #tpu.memory_space<vmem>>, vector<1x128xf32>,
    %cst_19 = arith.constant 0.000000e+00 : f32
    %14 = vector.broadcast %cst_19 : f32 to vector<1x128xf32>
    %c0_20 = arith.constant 0 : index
    %c0_21 = arith.constant 0 : index
    %15 = vector.load %arg8[%c0_20, %c0_21] : memref<16x128xf32, #tpu.memory_space<vmem>>, vector<1x128xf32>
    tpu.vector_store %arg8[%c0_20, %c0_21], %14 {strides = array<i32>} : memref<16x128xf32, #tpu.memory_space<vmem>>, vector<1x128xf32>,
    %c15_22 = arith.constant 15 : index
    %c0_23 = arith.constant 0 : index
    %16 = vector.load %arg1[%c15_22, %c0_23] : memref<16x128xf32, #tpu.memory_space<vmem>>, vector<1x128xf32>
    %cst_24 = arith.constant 0.000000e+00 : f32
    %17 = vector.broadcast %cst_24 : f32 to vector<1x128xf32>
    %18 = arith.maximumf %16, %17 : vector<1x128xf32>
    %c0_25 = arith.constant 0 : index
    %c0_26 = arith.constant 0 : index
    %19 = vector.load %arg1[%c0_25, %c0_26] : memref<16x128xf32, #tpu.memory_space<vmem>>, vector<1x128xf32>
    %cst_27 = arith.constant 0.000000e+00 : f32
    %20 = vector.broadcast %cst_27 : f32 to vector<1x128xf32>
    %21 = arith.maximumf %19, %20 : vector<1x128xf32>
    %c15_28 = arith.constant 15 : index
    %c0_29 = arith.constant 0 : index
    %22 = vector.load %arg2[%c15_28, %c0_29] : memref<16x128xf32, #tpu.memory_space<vmem>>, vector<1x128xf32>
    %cst_30 = arith.constant 0.000000e+00 : f32
    %23 = vector.broadcast %cst_30 : f32 to vector<1x128xf32>
    %24 = arith.maximumf %22, %23 : vector<1x128xf32>
    %c0_31 = arith.constant 0 : index
    %c0_32 = arith.constant 0 : index
    %25 = vector.load %arg2[%c0_31, %c0_32] : memref<16x128xf32, #tpu.memory_space<vmem>>, vector<1x128xf32>
    %cst_33 = arith.constant 0.000000e+00 : f32
    %26 = vector.broadcast %cst_33 : f32 to vector<1x128xf32>
    %27 = arith.maximumf %25, %26 : vector<1x128xf32>
    %c1_i32 = arith.constant 1 : i32
    %c15_i32 = arith.constant 15 : i32
    %28 = arith.subi %c15_i32, %c1_i32 : i32
    %29 = arith.mulf %18, %0 : vector<1x128xf32>
    %30 = arith.addf %29, %2 : vector<1x128xf32>
    %31 = arith.index_cast %28 : i32 to index
    %c0_34 = arith.constant 0 : index
    %32 = vector.load %arg1[%31, %c0_34] : memref<16x128xf32, #tpu.memory_space<vmem>>, vector<1x128xf32>
    %33 = arith.addf %30, %32 : vector<1x128xf32>
    %cst_35 = arith.constant 0.000000e+00 : f32
    %34 = vector.broadcast %cst_35 : f32 to vector<1x128xf32>
    %35 = arith.maximumf %33, %34 : vector<1x128xf32>
    %36 = arith.mulf %21, %1 : vector<1x128xf32>
    %37 = arith.addf %36, %3 : vector<1x128xf32>
    %38 = arith.index_cast %c1_i32 : i32 to index
    %c0_36 = arith.constant 0 : index
    %39 = vector.load %arg1[%38, %c0_36] : memref<16x128xf32, #tpu.memory_space<vmem>>, vector<1x128xf32>
    %40 = arith.addf %37, %39 : vector<1x128xf32>
    %cst_37 = arith.constant 0.000000e+00 : f32
    %41 = vector.broadcast %cst_37 : f32 to vector<1x128xf32>
    %42 = arith.maximumf %40, %41 : vector<1x128xf32>
    %43 = arith.index_cast %28 : i32 to index
    %c0_38 = arith.constant 0 : index
    %44 = vector.load %arg5[%43, %c0_38] : memref<16x128xf32, #tpu.memory_space<vmem>>, vector<1x128xf32>
    tpu.vector_store %arg5[%43, %c0_38], %35 {strides = array<i32>} : memref<16x128xf32, #tpu.memory_space<vmem>>, vector<1x128xf32>,
    %45 = arith.index_cast %c1_i32 : i32 to index
    %c0_39 = arith.constant 0 : index
    %46 = vector.load %arg6[%45, %c0_39] : memref<16x128xf32, #tpu.memory_space<vmem>>, vector<1x128xf32>
    tpu.vector_store %arg6[%45, %c0_39], %42 {strides = array<i32>} : memref<16x128xf32, #tpu.memory_space<vmem>>, vector<1x128xf32>,
    %c15_i32_40 = arith.constant 15 : i32
    %47 = arith.subi %c15_i32_40, %c1_i32 : i32
    %48 = arith.mulf %24, %4 : vector<1x128xf32>
    %49 = arith.addf %48, %6 : vector<1x128xf32>
    %50 = arith.index_cast %47 : i32 to index
    %c0_41 = arith.constant 0 : index
    %51 = vector.load %arg2[%50, %c0_41] : memref<16x128xf32, #tpu.memory_space<vmem>>, vector<1x128xf32>
    %52 = arith.addf %49, %51 : vector<1x128xf32>
    %cst_42 = arith.constant 0.000000e+00 : f32
    %53 = vector.broadcast %cst_42 : f32 to vector<1x128xf32>
    %54 = arith.maximumf %52, %53 : vector<1x128xf32>
    %55 = arith.mulf %27, %5 : vector<1x128xf32>
    %56 = arith.addf %55, %7 : vector<1x128xf32>
    %57 = arith.index_cast %c1_i32 : i32 to index
    %c0_43 = arith.constant 0 : index
    %58 = vector.load %arg2[%57, %c0_43] : memref<16x128xf32, #tpu.memory_space<vmem>>, vector<1x128xf32>
    %59 = arith.addf %56, %58 : vector<1x128xf32>
    %cst_44 = arith.constant 0.000000e+00 : f32
    %60 = vector.broadcast %cst_44 : f32 to vector<1x128xf32>
    %61 = arith.maximumf %59, %60 : vector<1x128xf32>
    %62 = arith.index_cast %47 : i32 to index
    %c0_45 = arith.constant 0 : index
    %63 = vector.load %arg7[%62, %c0_45] : memref<16x128xf32, #tpu.memory_space<vmem>>, vector<1x128xf32>
    tpu.vector_store %arg7[%62, %c0_45], %54 {strides = array<i32>} : memref<16x128xf32, #tpu.memory_space<vmem>>, vector<1x128xf32>,
    %64 = arith.index_cast %c1_i32 : i32 to index
    %c0_46 = arith.constant 0 : index
    %65 = vector.load %arg8[%64, %c0_46] : memref<16x128xf32, #tpu.memory_space<vmem>>, vector<1x128xf32>
    tpu.vector_store %arg8[%64, %c0_46], %61 {strides = array<i32>} : memref<16x128xf32, #tpu.memory_space<vmem>>, vector<1x128xf32>,
    %c2_i32 = arith.constant 2 : i32
    %c15_i32_47 = arith.constant 15 : i32
    %66 = arith.subi %c15_i32_47, %c2_i32 : i32
    %67 = arith.mulf %35, %0 : vector<1x128xf32>
    %68 = arith.addf %67, %2 : vector<1x128xf32>
    %69 = arith.index_cast %66 : i32 to index
    %c0_48 = arith.constant 0 : index
    %70 = vector.load %arg1[%69, %c0_48] : memref<16x128xf32, #tpu.memory_space<vmem>>, vector<1x128xf32>
    %71 = arith.addf %68, %70 : vector<1x128xf32>
    %cst_49 = arith.constant 0.000000e+00 : f32
    %72 = vector.broadcast %cst_49 : f32 to vector<1x128xf32>
    %73 = arith.maximumf %71, %72 : vector<1x128xf32>
    %74 = arith.mulf %42, %1 : vector<1x128xf32>
    %75 = arith.addf %74, %3 : vector<1x128xf32>
    %76 = arith.index_cast %c2_i32 : i32 to index
    %c0_50 = arith.constant 0 : index
    %77 = vector.load %arg1[%76, %c0_50] : memref<16x128xf32, #tpu.memory_space<vmem>>, vector<1x128xf32>
    %78 = arith.addf %75, %77 : vector<1x128xf32>
    %cst_51 = arith.constant 0.000000e+00 : f32
    %79 = vector.broadcast %cst_51 : f32 to vector<1x128xf32>
    %80 = arith.maximumf %78, %79 : vector<1x128xf32>
    %81 = arith.index_cast %66 : i32 to index
    %c0_52 = arith.constant 0 : index
    %82 = vector.load %arg5[%81, %c0_52] : memref<16x128xf32, #tpu.memory_space<vmem>>, vector<1x128xf32>
    tpu.vector_store %arg5[%81, %c0_52], %73 {strides = array<i32>} : memref<16x128xf32, #tpu.memory_space<vmem>>, vector<1x128xf32>,
    %83 = arith.index_cast %c2_i32 : i32 to index
    %c0_53 = arith.constant 0 : index
    %84 = vector.load %arg6[%83, %c0_53] : memref<16x128xf32, #tpu.memory_space<vmem>>, vector<1x128xf32>
    tpu.vector_store %arg6[%83, %c0_53], %80 {strides = array<i32>} : memref<16x128xf32, #tpu.memory_space<vmem>>, vector<1x128xf32>,
    %c15_i32_54 = arith.constant 15 : i32
    %85 = arith.subi %c15_i32_54, %c2_i32 : i32
    %86 = arith.mulf %54, %4 : vector<1x128xf32>
    %87 = arith.addf %86, %6 : vector<1x128xf32>
    %88 = arith.index_cast %85 : i32 to index
    %c0_55 = arith.constant 0 : index
    %89 = vector.load %arg2[%88, %c0_55] : memref<16x128xf32, #tpu.memory_space<vmem>>, vector<1x128xf32>
    %90 = arith.addf %87, %89 : vector<1x128xf32>
    %cst_56 = arith.constant 0.000000e+00 : f32
    %91 = vector.broadcast %cst_56 : f32 to vector<1x128xf32>
    %92 = arith.maximumf %90, %91 : vector<1x128xf32>
    %93 = arith.mulf %61, %5 : vector<1x128xf32>
    %94 = arith.addf %93, %7 : vector<1x128xf32>
    %95 = arith.index_cast %c2_i32 : i32 to index
    %c0_57 = arith.constant 0 : index
    %96 = vector.load %arg2[%95, %c0_57] : memref<16x128xf32, #tpu.memory_space<vmem>>, vector<1x128xf32>
    %97 = arith.addf %94, %96 : vector<1x128xf32>
    %cst_58 = arith.constant 0.000000e+00 : f32
    %98 = vector.broadcast %cst_58 : f32 to vector<1x128xf32>
    %99 = arith.maximumf %97, %98 : vector<1x128xf32>
    %100 = arith.index_cast %85 : i32 to index
    %c0_59 = arith.constant 0 : index
    %101 = vector.load %arg7[%100, %c0_59] : memref<16x128xf32, #tpu.memory_space<vmem>>, vector<1x128xf32>
    tpu.vector_store %arg7[%100, %c0_59], %92 {strides = array<i32>} : memref<16x128xf32, #tpu.memory_space<vmem>>, vector<1x128xf32>,
    %102 = arith.index_cast %c2_i32 : i32 to index
    %c0_60 = arith.constant 0 : index
    %103 = vector.load %arg8[%102, %c0_60] : memref<16x128xf32, #tpu.memory_space<vmem>>, vector<1x128xf32>
    tpu.vector_store %arg8[%102, %c0_60], %99 {strides = array<i32>} : memref<16x128xf32, #tpu.memory_space<vmem>>, vector<1x128xf32>,
    %c3_i32 = arith.constant 3 : i32
    %c15_i32_61 = arith.constant 15 : i32
    %104 = arith.subi %c15_i32_61, %c3_i32 : i32
    %105 = arith.mulf %73, %0 : vector<1x128xf32>
    %106 = arith.addf %105, %2 : vector<1x128xf32>
    %107 = arith.index_cast %104 : i32 to index
    %c0_62 = arith.constant 0 : index
    %108 = vector.load %arg1[%107, %c0_62] : memref<16x128xf32, #tpu.memory_space<vmem>>, vector<1x128xf32>
    %109 = arith.addf %106, %108 : vector<1x128xf32>
    %cst_63 = arith.constant 0.000000e+00 : f32
    %110 = vector.broadcast %cst_63 : f32 to vector<1x128xf32>
    %111 = arith.maximumf %109, %110 : vector<1x128xf32>
    %112 = arith.mulf %80, %1 : vector<1x128xf32>
    %113 = arith.addf %112, %3 : vector<1x128xf32>
    %114 = arith.index_cast %c3_i32 : i32 to index
    %c0_64 = arith.constant 0 : index
    %115 = vector.load %arg1[%114, %c0_64] : memref<16x128xf32, #tpu.memory_space<vmem>>, vector<1x128xf32>
    %116 = arith.addf %113, %115 : vector<1x128xf32>
    %cst_65 = arith.constant 0.000000e+00 : f32
    %117 = vector.broadcast %cst_65 : f32 to vector<1x128xf32>
    %118 = arith.maximumf %116, %117 : vector<1x128xf32>
    %119 = arith.index_cast %104 : i32 to index
    %c0_66 = arith.constant 0 : index
    %120 = vector.load %arg5[%119, %c0_66] : memref<16x128xf32, #tpu.memory_space<vmem>>, vector<1x128xf32>
    tpu.vector_store %arg5[%119, %c0_66], %111 {strides = array<i32>} : memref<16x128xf32, #tpu.memory_space<vmem>>, vector<1x128xf32>,
    %121 = arith.index_cast %c3_i32 : i32 to index
    %c0_67 = arith.constant 0 : index
    %122 = vector.load %arg6[%121, %c0_67] : memref<16x128xf32, #tpu.memory_space<vmem>>, vector<1x128xf32>
    tpu.vector_store %arg6[%121, %c0_67], %118 {strides = array<i32>} : memref<16x128xf32, #tpu.memory_space<vmem>>, vector<1x128xf32>,
    %c15_i32_68 = arith.constant 15 : i32
    %123 = arith.subi %c15_i32_68, %c3_i32 : i32
    %124 = arith.mulf %92, %4 : vector<1x128xf32>
    %125 = arith.addf %124, %6 : vector<1x128xf32>
    %126 = arith.index_cast %123 : i32 to index
    %c0_69 = arith.constant 0 : index
    %127 = vector.load %arg2[%126, %c0_69] : memref<16x128xf32, #tpu.memory_space<vmem>>, vector<1x128xf32>
    %128 = arith.addf %125, %127 : vector<1x128xf32>
    %cst_70 = arith.constant 0.000000e+00 : f32
    %129 = vector.broadcast %cst_70 : f32 to vector<1x128xf32>
    %130 = arith.maximumf %128, %129 : vector<1x128xf32>
    %131 = arith.mulf %99, %5 : vector<1x128xf32>
    %132 = arith.addf %131, %7 : vector<1x128xf32>
    %133 = arith.index_cast %c3_i32 : i32 to index
    %c0_71 = arith.constant 0 : index
    %134 = vector.load %arg2[%133, %c0_71] : memref<16x128xf32, #tpu.memory_space<vmem>>, vector<1x128xf32>
    %135 = arith.addf %132, %134 : vector<1x128xf32>
    %cst_72 = arith.constant 0.000000e+00 : f32
    %136 = vector.broadcast %cst_72 : f32 to vector<1x128xf32>
    %137 = arith.maximumf %135, %136 : vector<1x128xf32>
    %138 = arith.index_cast %123 : i32 to index
    %c0_73 = arith.constant 0 : index
    %139 = vector.load %arg7[%138, %c0_73] : memref<16x128xf32, #tpu.memory_space<vmem>>, vector<1x128xf32>
    tpu.vector_store %arg7[%138, %c0_73], %130 {strides = array<i32>} : memref<16x128xf32, #tpu.memory_space<vmem>>, vector<1x128xf32>,
    %140 = arith.index_cast %c3_i32 : i32 to index
    %c0_74 = arith.constant 0 : index
    %141 = vector.load %arg8[%140, %c0_74] : memref<16x128xf32, #tpu.memory_space<vmem>>, vector<1x128xf32>
    tpu.vector_store %arg8[%140, %c0_74], %137 {strides = array<i32>} : memref<16x128xf32, #tpu.memory_space<vmem>>, vector<1x128xf32>,
    %c4_i32 = arith.constant 4 : i32
    %c15_i32_75 = arith.constant 15 : i32
    %142 = arith.subi %c15_i32_75, %c4_i32 : i32
    %143 = arith.mulf %111, %0 : vector<1x128xf32>
    %144 = arith.addf %143, %2 : vector<1x128xf32>
    %145 = arith.index_cast %142 : i32 to index
    %c0_76 = arith.constant 0 : index
    %146 = vector.load %arg1[%145, %c0_76] : memref<16x128xf32, #tpu.memory_space<vmem>>, vector<1x128xf32>
    %147 = arith.addf %144, %146 : vector<1x128xf32>
    %cst_77 = arith.constant 0.000000e+00 : f32
    %148 = vector.broadcast %cst_77 : f32 to vector<1x128xf32>
    %149 = arith.maximumf %147, %148 : vector<1x128xf32>
    %150 = arith.mulf %118, %1 : vector<1x128xf32>
    %151 = arith.addf %150, %3 : vector<1x128xf32>
    %152 = arith.index_cast %c4_i32 : i32 to index
    %c0_78 = arith.constant 0 : index
    %153 = vector.load %arg1[%152, %c0_78] : memref<16x128xf32, #tpu.memory_space<vmem>>, vector<1x128xf32>
    %154 = arith.addf %151, %153 : vector<1x128xf32>
    %cst_79 = arith.constant 0.000000e+00 : f32
    %155 = vector.broadcast %cst_79 : f32 to vector<1x128xf32>
    %156 = arith.maximumf %154, %155 : vector<1x128xf32>
    %157 = arith.index_cast %142 : i32 to index
    %c0_80 = arith.constant 0 : index
    %158 = vector.load %arg5[%157, %c0_80] : memref<16x128xf32, #tpu.memory_space<vmem>>, vector<1x128xf32>
    tpu.vector_store %arg5[%157, %c0_80], %149 {strides = array<i32>} : memref<16x128xf32, #tpu.memory_space<vmem>>, vector<1x128xf32>,
    %159 = arith.index_cast %c4_i32 : i32 to index
    %c0_81 = arith.constant 0 : index
    %160 = vector.load %arg6[%159, %c0_81] : memref<16x128xf32, #tpu.memory_space<vmem>>, vector<1x128xf32>
    tpu.vector_store %arg6[%159, %c0_81], %156 {strides = array<i32>} : memref<16x128xf32, #tpu.memory_space<vmem>>, vector<1x128xf32>,
    %c15_i32_82 = arith.constant 15 : i32
    %161 = arith.subi %c15_i32_82, %c4_i32 : i32
    %162 = arith.mulf %130, %4 : vector<1x128xf32>
    %163 = arith.addf %162, %6 : vector<1x128xf32>
    %164 = arith.index_cast %161 : i32 to index
    %c0_83 = arith.constant 0 : index
    %165 = vector.load %arg2[%164, %c0_83] : memref<16x128xf32, #tpu.memory_space<vmem>>, vector<1x128xf32>
    %166 = arith.addf %163, %165 : vector<1x128xf32>
    %cst_84 = arith.constant 0.000000e+00 : f32
    %167 = vector.broadcast %cst_84 : f32 to vector<1x128xf32>
    %168 = arith.maximumf %166, %167 : vector<1x128xf32>
    %169 = arith.mulf %137, %5 : vector<1x128xf32>
    %170 = arith.addf %169, %7 : vector<1x128xf32>
    %171 = arith.index_cast %c4_i32 : i32 to index
    %c0_85 = arith.constant 0 : index
    %172 = vector.load %arg2[%171, %c0_85] : memref<16x128xf32, #tpu.memory_space<vmem>>, vector<1x128xf32>
    %173 = arith.addf %170, %172 : vector<1x128xf32>
    %cst_86 = arith.constant 0.000000e+00 : f32
    %174 = vector.broadcast %cst_86 : f32 to vector<1x128xf32>
    %175 = arith.maximumf %173, %174 : vector<1x128xf32>
    %176 = arith.index_cast %161 : i32 to index
    %c0_87 = arith.constant 0 : index
    %177 = vector.load %arg7[%176, %c0_87] : memref<16x128xf32, #tpu.memory_space<vmem>>, vector<1x128xf32>
    tpu.vector_store %arg7[%176, %c0_87], %168 {strides = array<i32>} : memref<16x128xf32, #tpu.memory_space<vmem>>, vector<1x128xf32>,
    %178 = arith.index_cast %c4_i32 : i32 to index
    %c0_88 = arith.constant 0 : index
    %179 = vector.load %arg8[%178, %c0_88] : memref<16x128xf32, #tpu.memory_space<vmem>>, vector<1x128xf32>
    tpu.vector_store %arg8[%178, %c0_88], %175 {strides = array<i32>} : memref<16x128xf32, #tpu.memory_space<vmem>>, vector<1x128xf32>,
    %c5_i32 = arith.constant 5 : i32
    %c15_i32_89 = arith.constant 15 : i32
    %180 = arith.subi %c15_i32_89, %c5_i32 : i32
    %181 = arith.mulf %149, %0 : vector<1x128xf32>
    %182 = arith.addf %181, %2 : vector<1x128xf32>
    %183 = arith.index_cast %180 : i32 to index
    %c0_90 = arith.constant 0 : index
    %184 = vector.load %arg1[%183, %c0_90] : memref<16x128xf32, #tpu.memory_space<vmem>>, vector<1x128xf32>
    %185 = arith.addf %182, %184 : vector<1x128xf32>
    %cst_91 = arith.constant 0.000000e+00 : f32
    %186 = vector.broadcast %cst_91 : f32 to vector<1x128xf32>
    %187 = arith.maximumf %185, %186 : vector<1x128xf32>
    %188 = arith.mulf %156, %1 : vector<1x128xf32>
    %189 = arith.addf %188, %3 : vector<1x128xf32>
    %190 = arith.index_cast %c5_i32 : i32 to index
    %c0_92 = arith.constant 0 : index
    %191 = vector.load %arg1[%190, %c0_92] : memref<16x128xf32, #tpu.memory_space<vmem>>, vector<1x128xf32>
    %192 = arith.addf %189, %191 : vector<1x128xf32>
    %cst_93 = arith.constant 0.000000e+00 : f32
    %193 = vector.broadcast %cst_93 : f32 to vector<1x128xf32>
    %194 = arith.maximumf %192, %193 : vector<1x128xf32>
    %195 = arith.index_cast %180 : i32 to index
    %c0_94 = arith.constant 0 : index
    %196 = vector.load %arg5[%195, %c0_94] : memref<16x128xf32, #tpu.memory_space<vmem>>, vector<1x128xf32>
    tpu.vector_store %arg5[%195, %c0_94], %187 {strides = array<i32>} : memref<16x128xf32, #tpu.memory_space<vmem>>, vector<1x128xf32>,
    %197 = arith.index_cast %c5_i32 : i32 to index
    %c0_95 = arith.constant 0 : index
    %198 = vector.load %arg6[%197, %c0_95] : memref<16x128xf32, #tpu.memory_space<vmem>>, vector<1x128xf32>
    tpu.vector_store %arg6[%197, %c0_95], %194 {strides = array<i32>} : memref<16x128xf32, #tpu.memory_space<vmem>>, vector<1x128xf32>,
    %c15_i32_96 = arith.constant 15 : i32
    %199 = arith.subi %c15_i32_96, %c5_i32 : i32
    %200 = arith.mulf %168, %4 : vector<1x128xf32>
    %201 = arith.addf %200, %6 : vector<1x128xf32>
    %202 = arith.index_cast %199 : i32 to index
    %c0_97 = arith.constant 0 : index
    %203 = vector.load %arg2[%202, %c0_97] : memref<16x128xf32, #tpu.memory_space<vmem>>, vector<1x128xf32>
    %204 = arith.addf %201, %203 : vector<1x128xf32>
    %cst_98 = arith.constant 0.000000e+00 : f32
    %205 = vector.broadcast %cst_98 : f32 to vector<1x128xf32>
    %206 = arith.maximumf %204, %205 : vector<1x128xf32>
    %207 = arith.mulf %175, %5 : vector<1x128xf32>
    %208 = arith.addf %207, %7 : vector<1x128xf32>
    %209 = arith.index_cast %c5_i32 : i32 to index
    %c0_99 = arith.constant 0 : index
    %210 = vector.load %arg2[%209, %c0_99] : memref<16x128xf32, #tpu.memory_space<vmem>>, vector<1x128xf32>
    %211 = arith.addf %208, %210 : vector<1x128xf32>
    %cst_100 = arith.constant 0.000000e+00 : f32
    %212 = vector.broadcast %cst_100 : f32 to vector<1x128xf32>
    %213 = arith.maximumf %211, %212 : vector<1x128xf32>
    %214 = arith.index_cast %199 : i32 to index
    %c0_101 = arith.constant 0 : index
    %215 = vector.load %arg7[%214, %c0_101] : memref<16x128xf32, #tpu.memory_space<vmem>>, vector<1x128xf32>
    tpu.vector_store %arg7[%214, %c0_101], %206 {strides = array<i32>} : memref<16x128xf32, #tpu.memory_space<vmem>>, vector<1x128xf32>,
    %216 = arith.index_cast %c5_i32 : i32 to index
    %c0_102 = arith.constant 0 : index
    %217 = vector.load %arg8[%216, %c0_102] : memref<16x128xf32, #tpu.memory_space<vmem>>, vector<1x128xf32>
    tpu.vector_store %arg8[%216, %c0_102], %213 {strides = array<i32>} : memref<16x128xf32, #tpu.memory_space<vmem>>, vector<1x128xf32>,
    %c6_i32 = arith.constant 6 : i32
    %c15_i32_103 = arith.constant 15 : i32
    %218 = arith.subi %c15_i32_103, %c6_i32 : i32
    %219 = arith.mulf %187, %0 : vector<1x128xf32>
    %220 = arith.addf %219, %2 : vector<1x128xf32>
    %221 = arith.index_cast %218 : i32 to index
    %c0_104 = arith.constant 0 : index
    %222 = vector.load %arg1[%221, %c0_104] : memref<16x128xf32, #tpu.memory_space<vmem>>, vector<1x128xf32>
    %223 = arith.addf %220, %222 : vector<1x128xf32>
    %cst_105 = arith.constant 0.000000e+00 : f32
    %224 = vector.broadcast %cst_105 : f32 to vector<1x128xf32>
    %225 = arith.maximumf %223, %224 : vector<1x128xf32>
    %226 = arith.mulf %194, %1 : vector<1x128xf32>
    %227 = arith.addf %226, %3 : vector<1x128xf32>
    %228 = arith.index_cast %c6_i32 : i32 to index
    %c0_106 = arith.constant 0 : index
    %229 = vector.load %arg1[%228, %c0_106] : memref<16x128xf32, #tpu.memory_space<vmem>>, vector<1x128xf32>
    %230 = arith.addf %227, %229 : vector<1x128xf32>
    %cst_107 = arith.constant 0.000000e+00 : f32
    %231 = vector.broadcast %cst_107 : f32 to vector<1x128xf32>
    %232 = arith.maximumf %230, %231 : vector<1x128xf32>
    %233 = arith.index_cast %218 : i32 to index
    %c0_108 = arith.constant 0 : index
    %234 = vector.load %arg5[%233, %c0_108] : memref<16x128xf32, #tpu.memory_space<vmem>>, vector<1x128xf32>
    tpu.vector_store %arg5[%233, %c0_108], %225 {strides = array<i32>} : memref<16x128xf32, #tpu.memory_space<vmem>>, vector<1x128xf32>,
    %235 = arith.index_cast %c6_i32 : i32 to index
    %c0_109 = arith.constant 0 : index
    %236 = vector.load %arg6[%235, %c0_109] : memref<16x128xf32, #tpu.memory_space<vmem>>, vector<1x128xf32>
    tpu.vector_store %arg6[%235, %c0_109], %232 {strides = array<i32>} : memref<16x128xf32, #tpu.memory_space<vmem>>, vector<1x128xf32>,
    %c15_i32_110 = arith.constant 15 : i32
    %237 = arith.subi %c15_i32_110, %c6_i32 : i32
    %238 = arith.mulf %206, %4 : vector<1x128xf32>
    %239 = arith.addf %238, %6 : vector<1x128xf32>
    %240 = arith.index_cast %237 : i32 to index
    %c0_111 = arith.constant 0 : index
    %241 = vector.load %arg2[%240, %c0_111] : memref<16x128xf32, #tpu.memory_space<vmem>>, vector<1x128xf32>
    %242 = arith.addf %239, %241 : vector<1x128xf32>
    %cst_112 = arith.constant 0.000000e+00 : f32
    %243 = vector.broadcast %cst_112 : f32 to vector<1x128xf32>
    %244 = arith.maximumf %242, %243 : vector<1x128xf32>
    %245 = arith.mulf %213, %5 : vector<1x128xf32>
    %246 = arith.addf %245, %7 : vector<1x128xf32>
    %247 = arith.index_cast %c6_i32 : i32 to index
    %c0_113 = arith.constant 0 : index
    %248 = vector.load %arg2[%247, %c0_113] : memref<16x128xf32, #tpu.memory_space<vmem>>, vector<1x128xf32>
    %249 = arith.addf %246, %248 : vector<1x128xf32>
    %cst_114 = arith.constant 0.000000e+00 : f32
    %250 = vector.broadcast %cst_114 : f32 to vector<1x128xf32>
    %251 = arith.maximumf %249, %250 : vector<1x128xf32>
    %252 = arith.index_cast %237 : i32 to index
    %c0_115 = arith.constant 0 : index
    %253 = vector.load %arg7[%252, %c0_115] : memref<16x128xf32, #tpu.memory_space<vmem>>, vector<1x128xf32>
    tpu.vector_store %arg7[%252, %c0_115], %244 {strides = array<i32>} : memref<16x128xf32, #tpu.memory_space<vmem>>, vector<1x128xf32>,
    %254 = arith.index_cast %c6_i32 : i32 to index
    %c0_116 = arith.constant 0 : index
    %255 = vector.load %arg8[%254, %c0_116] : memref<16x128xf32, #tpu.memory_space<vmem>>, vector<1x128xf32>
    tpu.vector_store %arg8[%254, %c0_116], %251 {strides = array<i32>} : memref<16x128xf32, #tpu.memory_space<vmem>>, vector<1x128xf32>,
    %c7_i32 = arith.constant 7 : i32
    %c15_i32_117 = arith.constant 15 : i32
    %256 = arith.subi %c15_i32_117, %c7_i32 : i32
    %257 = arith.mulf %225, %0 : vector<1x128xf32>
    %258 = arith.addf %257, %2 : vector<1x128xf32>
    %259 = arith.index_cast %256 : i32 to index
    %c0_118 = arith.constant 0 : index
    %260 = vector.load %arg1[%259, %c0_118] : memref<16x128xf32, #tpu.memory_space<vmem>>, vector<1x128xf32>
    %261 = arith.addf %258, %260 : vector<1x128xf32>
    %cst_119 = arith.constant 0.000000e+00 : f32
    %262 = vector.broadcast %cst_119 : f32 to vector<1x128xf32>
    %263 = arith.maximumf %261, %262 : vector<1x128xf32>
    %264 = arith.mulf %232, %1 : vector<1x128xf32>
    %265 = arith.addf %264, %3 : vector<1x128xf32>
    %266 = arith.index_cast %c7_i32 : i32 to index
    %c0_120 = arith.constant 0 : index
    %267 = vector.load %arg1[%266, %c0_120] : memref<16x128xf32, #tpu.memory_space<vmem>>, vector<1x128xf32>
    %268 = arith.addf %265, %267 : vector<1x128xf32>
    %cst_121 = arith.constant 0.000000e+00 : f32
    %269 = vector.broadcast %cst_121 : f32 to vector<1x128xf32>
    %270 = arith.maximumf %268, %269 : vector<1x128xf32>
    %271 = arith.index_cast %256 : i32 to index
    %c0_122 = arith.constant 0 : index
    %272 = vector.load %arg5[%271, %c0_122] : memref<16x128xf32, #tpu.memory_space<vmem>>, vector<1x128xf32>
    tpu.vector_store %arg5[%271, %c0_122], %263 {strides = array<i32>} : memref<16x128xf32, #tpu.memory_space<vmem>>, vector<1x128xf32>,
    %273 = arith.index_cast %c7_i32 : i32 to index
    %c0_123 = arith.constant 0 : index
    %274 = vector.load %arg6[%273, %c0_123] : memref<16x128xf32, #tpu.memory_space<vmem>>, vector<1x128xf32>
    tpu.vector_store %arg6[%273, %c0_123], %270 {strides = array<i32>} : memref<16x128xf32, #tpu.memory_space<vmem>>, vector<1x128xf32>,
    %c15_i32_124 = arith.constant 15 : i32
    %275 = arith.subi %c15_i32_124, %c7_i32 : i32
    %276 = arith.mulf %244, %4 : vector<1x128xf32>
    %277 = arith.addf %276, %6 : vector<1x128xf32>
    %278 = arith.index_cast %275 : i32 to index
    %c0_125 = arith.constant 0 : index
    %279 = vector.load %arg2[%278, %c0_125] : memref<16x128xf32, #tpu.memory_space<vmem>>, vector<1x128xf32>
    %280 = arith.addf %277, %279 : vector<1x128xf32>
    %cst_126 = arith.constant 0.000000e+00 : f32
    %281 = vector.broadcast %cst_126 : f32 to vector<1x128xf32>
    %282 = arith.maximumf %280, %281 : vector<1x128xf32>
    %283 = arith.mulf %251, %5 : vector<1x128xf32>
    %284 = arith.addf %283, %7 : vector<1x128xf32>
    %285 = arith.index_cast %c7_i32 : i32 to index
    %c0_127 = arith.constant 0 : index
    %286 = vector.load %arg2[%285, %c0_127] : memref<16x128xf32, #tpu.memory_space<vmem>>, vector<1x128xf32>
    %287 = arith.addf %284, %286 : vector<1x128xf32>
    %cst_128 = arith.constant 0.000000e+00 : f32
    %288 = vector.broadcast %cst_128 : f32 to vector<1x128xf32>
    %289 = arith.maximumf %287, %288 : vector<1x128xf32>
    %290 = arith.index_cast %275 : i32 to index
    %c0_129 = arith.constant 0 : index
    %291 = vector.load %arg7[%290, %c0_129] : memref<16x128xf32, #tpu.memory_space<vmem>>, vector<1x128xf32>
    tpu.vector_store %arg7[%290, %c0_129], %282 {strides = array<i32>} : memref<16x128xf32, #tpu.memory_space<vmem>>, vector<1x128xf32>,
    %292 = arith.index_cast %c7_i32 : i32 to index
    %c0_130 = arith.constant 0 : index
    %293 = vector.load %arg8[%292, %c0_130] : memref<16x128xf32, #tpu.memory_space<vmem>>, vector<1x128xf32>
    tpu.vector_store %arg8[%292, %c0_130], %289 {strides = array<i32>} : memref<16x128xf32, #tpu.memory_space<vmem>>, vector<1x128xf32>,
    %c8_i32 = arith.constant 8 : i32
    %c15_i32_131 = arith.constant 15 : i32
    %294 = arith.subi %c15_i32_131, %c8_i32 : i32
    %295 = arith.mulf %263, %0 : vector<1x128xf32>
    %296 = arith.addf %295, %2 : vector<1x128xf32>
    %297 = arith.index_cast %294 : i32 to index
    %c0_132 = arith.constant 0 : index
    %298 = vector.load %arg1[%297, %c0_132] : memref<16x128xf32, #tpu.memory_space<vmem>>, vector<1x128xf32>
    %299 = arith.addf %296, %298 : vector<1x128xf32>
    %cst_133 = arith.constant 0.000000e+00 : f32
    %300 = vector.broadcast %cst_133 : f32 to vector<1x128xf32>
    %301 = arith.maximumf %299, %300 : vector<1x128xf32>
    %302 = arith.mulf %270, %1 : vector<1x128xf32>
    %303 = arith.addf %302, %3 : vector<1x128xf32>
    %304 = arith.index_cast %c8_i32 : i32 to index
    %c0_134 = arith.constant 0 : index
    %305 = vector.load %arg1[%304, %c0_134] : memref<16x128xf32, #tpu.memory_space<vmem>>, vector<1x128xf32>
    %306 = arith.addf %303, %305 : vector<1x128xf32>
    %cst_135 = arith.constant 0.000000e+00 : f32
    %307 = vector.broadcast %cst_135 : f32 to vector<1x128xf32>
    %308 = arith.maximumf %306, %307 : vector<1x128xf32>
    %309 = arith.index_cast %294 : i32 to index
    %c0_136 = arith.constant 0 : index
    %310 = vector.load %arg5[%309, %c0_136] : memref<16x128xf32, #tpu.memory_space<vmem>>, vector<1x128xf32>
    tpu.vector_store %arg5[%309, %c0_136], %301 {strides = array<i32>} : memref<16x128xf32, #tpu.memory_space<vmem>>, vector<1x128xf32>,
    %311 = arith.index_cast %c8_i32 : i32 to index
    %c0_137 = arith.constant 0 : index
    %312 = vector.load %arg6[%311, %c0_137] : memref<16x128xf32, #tpu.memory_space<vmem>>, vector<1x128xf32>
    tpu.vector_store %arg6[%311, %c0_137], %308 {strides = array<i32>} : memref<16x128xf32, #tpu.memory_space<vmem>>, vector<1x128xf32>,
    %c15_i32_138 = arith.constant 15 : i32
    %313 = arith.subi %c15_i32_138, %c8_i32 : i32
    %314 = arith.mulf %282, %4 : vector<1x128xf32>
    %315 = arith.addf %314, %6 : vector<1x128xf32>
    %316 = arith.index_cast %313 : i32 to index
    %c0_139 = arith.constant 0 : index
    %317 = vector.load %arg2[%316, %c0_139] : memref<16x128xf32, #tpu.memory_space<vmem>>, vector<1x128xf32>
    %318 = arith.addf %315, %317 : vector<1x128xf32>
    %cst_140 = arith.constant 0.000000e+00 : f32
    %319 = vector.broadcast %cst_140 : f32 to vector<1x128xf32>
    %320 = arith.maximumf %318, %319 : vector<1x128xf32>
    %321 = arith.mulf %289, %5 : vector<1x128xf32>
    %322 = arith.addf %321, %7 : vector<1x128xf32>
    %323 = arith.index_cast %c8_i32 : i32 to index
    %c0_141 = arith.constant 0 : index
    %324 = vector.load %arg2[%323, %c0_141] : memref<16x128xf32, #tpu.memory_space<vmem>>, vector<1x128xf32>
    %325 = arith.addf %322, %324 : vector<1x128xf32>
    %cst_142 = arith.constant 0.000000e+00 : f32
    %326 = vector.broadcast %cst_142 : f32 to vector<1x128xf32>
    %327 = arith.maximumf %325, %326 : vector<1x128xf32>
    %328 = arith.index_cast %313 : i32 to index
    %c0_143 = arith.constant 0 : index
    %329 = vector.load %arg7[%328, %c0_143] : memref<16x128xf32, #tpu.memory_space<vmem>>, vector<1x128xf32>
    tpu.vector_store %arg7[%328, %c0_143], %320 {strides = array<i32>} : memref<16x128xf32, #tpu.memory_space<vmem>>, vector<1x128xf32>,
    %330 = arith.index_cast %c8_i32 : i32 to index
    %c0_144 = arith.constant 0 : index
    %331 = vector.load %arg8[%330, %c0_144] : memref<16x128xf32, #tpu.memory_space<vmem>>, vector<1x128xf32>
    tpu.vector_store %arg8[%330, %c0_144], %327 {strides = array<i32>} : memref<16x128xf32, #tpu.memory_space<vmem>>, vector<1x128xf32>,
    %c9_i32 = arith.constant 9 : i32
    %c15_i32_145 = arith.constant 15 : i32
    %332 = arith.subi %c15_i32_145, %c9_i32 : i32
    %333 = arith.mulf %301, %0 : vector<1x128xf32>
    %334 = arith.addf %333, %2 : vector<1x128xf32>
    %335 = arith.index_cast %332 : i32 to index
    %c0_146 = arith.constant 0 : index
    %336 = vector.load %arg1[%335, %c0_146] : memref<16x128xf32, #tpu.memory_space<vmem>>, vector<1x128xf32>
    %337 = arith.addf %334, %336 : vector<1x128xf32>
    %cst_147 = arith.constant 0.000000e+00 : f32
    %338 = vector.broadcast %cst_147 : f32 to vector<1x128xf32>
    %339 = arith.maximumf %337, %338 : vector<1x128xf32>
    %340 = arith.mulf %308, %1 : vector<1x128xf32>
    %341 = arith.addf %340, %3 : vector<1x128xf32>
    %342 = arith.index_cast %c9_i32 : i32 to index
    %c0_148 = arith.constant 0 : index
    %343 = vector.load %arg1[%342, %c0_148] : memref<16x128xf32, #tpu.memory_space<vmem>>, vector<1x128xf32>
    %344 = arith.addf %341, %343 : vector<1x128xf32>
    %cst_149 = arith.constant 0.000000e+00 : f32
    %345 = vector.broadcast %cst_149 : f32 to vector<1x128xf32>
    %346 = arith.maximumf %344, %345 : vector<1x128xf32>
    %347 = arith.index_cast %332 : i32 to index
    %c0_150 = arith.constant 0 : index
    %348 = vector.load %arg5[%347, %c0_150] : memref<16x128xf32, #tpu.memory_space<vmem>>, vector<1x128xf32>
    tpu.vector_store %arg5[%347, %c0_150], %339 {strides = array<i32>} : memref<16x128xf32, #tpu.memory_space<vmem>>, vector<1x128xf32>,
    %349 = arith.index_cast %c9_i32 : i32 to index
    %c0_151 = arith.constant 0 : index
    %350 = vector.load %arg6[%349, %c0_151] : memref<16x128xf32, #tpu.memory_space<vmem>>, vector<1x128xf32>
    tpu.vector_store %arg6[%349, %c0_151], %346 {strides = array<i32>} : memref<16x128xf32, #tpu.memory_space<vmem>>, vector<1x128xf32>,
    %c15_i32_152 = arith.constant 15 : i32
    %351 = arith.subi %c15_i32_152, %c9_i32 : i32
    %352 = arith.mulf %320, %4 : vector<1x128xf32>
    %353 = arith.addf %352, %6 : vector<1x128xf32>
    %354 = arith.index_cast %351 : i32 to index
    %c0_153 = arith.constant 0 : index
    %355 = vector.load %arg2[%354, %c0_153] : memref<16x128xf32, #tpu.memory_space<vmem>>, vector<1x128xf32>
    %356 = arith.addf %353, %355 : vector<1x128xf32>
    %cst_154 = arith.constant 0.000000e+00 : f32
    %357 = vector.broadcast %cst_154 : f32 to vector<1x128xf32>
    %358 = arith.maximumf %356, %357 : vector<1x128xf32>
    %359 = arith.mulf %327, %5 : vector<1x128xf32>
    %360 = arith.addf %359, %7 : vector<1x128xf32>
    %361 = arith.index_cast %c9_i32 : i32 to index
    %c0_155 = arith.constant 0 : index
    %362 = vector.load %arg2[%361, %c0_155] : memref<16x128xf32, #tpu.memory_space<vmem>>, vector<1x128xf32>
    %363 = arith.addf %360, %362 : vector<1x128xf32>
    %cst_156 = arith.constant 0.000000e+00 : f32
    %364 = vector.broadcast %cst_156 : f32 to vector<1x128xf32>
    %365 = arith.maximumf %363, %364 : vector<1x128xf32>
    %366 = arith.index_cast %351 : i32 to index
    %c0_157 = arith.constant 0 : index
    %367 = vector.load %arg7[%366, %c0_157] : memref<16x128xf32, #tpu.memory_space<vmem>>, vector<1x128xf32>
    tpu.vector_store %arg7[%366, %c0_157], %358 {strides = array<i32>} : memref<16x128xf32, #tpu.memory_space<vmem>>, vector<1x128xf32>,
    %368 = arith.index_cast %c9_i32 : i32 to index
    %c0_158 = arith.constant 0 : index
    %369 = vector.load %arg8[%368, %c0_158] : memref<16x128xf32, #tpu.memory_space<vmem>>, vector<1x128xf32>
    tpu.vector_store %arg8[%368, %c0_158], %365 {strides = array<i32>} : memref<16x128xf32, #tpu.memory_space<vmem>>, vector<1x128xf32>,
    %c10_i32 = arith.constant 10 : i32
    %c15_i32_159 = arith.constant 15 : i32
    %370 = arith.subi %c15_i32_159, %c10_i32 : i32
    %371 = arith.mulf %339, %0 : vector<1x128xf32>
    %372 = arith.addf %371, %2 : vector<1x128xf32>
    %373 = arith.index_cast %370 : i32 to index
    %c0_160 = arith.constant 0 : index
    %374 = vector.load %arg1[%373, %c0_160] : memref<16x128xf32, #tpu.memory_space<vmem>>, vector<1x128xf32>
    %375 = arith.addf %372, %374 : vector<1x128xf32>
    %cst_161 = arith.constant 0.000000e+00 : f32
    %376 = vector.broadcast %cst_161 : f32 to vector<1x128xf32>
    %377 = arith.maximumf %375, %376 : vector<1x128xf32>
    %378 = arith.mulf %346, %1 : vector<1x128xf32>
    %379 = arith.addf %378, %3 : vector<1x128xf32>
    %380 = arith.index_cast %c10_i32 : i32 to index
    %c0_162 = arith.constant 0 : index
    %381 = vector.load %arg1[%380, %c0_162] : memref<16x128xf32, #tpu.memory_space<vmem>>, vector<1x128xf32>
    %382 = arith.addf %379, %381 : vector<1x128xf32>
    %cst_163 = arith.constant 0.000000e+00 : f32
    %383 = vector.broadcast %cst_163 : f32 to vector<1x128xf32>
    %384 = arith.maximumf %382, %383 : vector<1x128xf32>
    %385 = arith.index_cast %370 : i32 to index
    %c0_164 = arith.constant 0 : index
    %386 = vector.load %arg5[%385, %c0_164] : memref<16x128xf32, #tpu.memory_space<vmem>>, vector<1x128xf32>
    tpu.vector_store %arg5[%385, %c0_164], %377 {strides = array<i32>} : memref<16x128xf32, #tpu.memory_space<vmem>>, vector<1x128xf32>,
    %387 = arith.index_cast %c10_i32 : i32 to index
    %c0_165 = arith.constant 0 : index
    %388 = vector.load %arg6[%387, %c0_165] : memref<16x128xf32, #tpu.memory_space<vmem>>, vector<1x128xf32>
    tpu.vector_store %arg6[%387, %c0_165], %384 {strides = array<i32>} : memref<16x128xf32, #tpu.memory_space<vmem>>, vector<1x128xf32>,
    %c15_i32_166 = arith.constant 15 : i32
    %389 = arith.subi %c15_i32_166, %c10_i32 : i32
    %390 = arith.mulf %358, %4 : vector<1x128xf32>
    %391 = arith.addf %390, %6 : vector<1x128xf32>
    %392 = arith.index_cast %389 : i32 to index
    %c0_167 = arith.constant 0 : index
    %393 = vector.load %arg2[%392, %c0_167] : memref<16x128xf32, #tpu.memory_space<vmem>>, vector<1x128xf32>
    %394 = arith.addf %391, %393 : vector<1x128xf32>
    %cst_168 = arith.constant 0.000000e+00 : f32
    %395 = vector.broadcast %cst_168 : f32 to vector<1x128xf32>
    %396 = arith.maximumf %394, %395 : vector<1x128xf32>
    %397 = arith.mulf %365, %5 : vector<1x128xf32>
    %398 = arith.addf %397, %7 : vector<1x128xf32>
    %399 = arith.index_cast %c10_i32 : i32 to index
    %c0_169 = arith.constant 0 : index
    %400 = vector.load %arg2[%399, %c0_169] : memref<16x128xf32, #tpu.memory_space<vmem>>, vector<1x128xf32>
    %401 = arith.addf %398, %400 : vector<1x128xf32>
    %cst_170 = arith.constant 0.000000e+00 : f32
    %402 = vector.broadcast %cst_170 : f32 to vector<1x128xf32>
    %403 = arith.maximumf %401, %402 : vector<1x128xf32>
    %404 = arith.index_cast %389 : i32 to index
    %c0_171 = arith.constant 0 : index
    %405 = vector.load %arg7[%404, %c0_171] : memref<16x128xf32, #tpu.memory_space<vmem>>, vector<1x128xf32>
    tpu.vector_store %arg7[%404, %c0_171], %396 {strides = array<i32>} : memref<16x128xf32, #tpu.memory_space<vmem>>, vector<1x128xf32>,
    %406 = arith.index_cast %c10_i32 : i32 to index
    %c0_172 = arith.constant 0 : index
    %407 = vector.load %arg8[%406, %c0_172] : memref<16x128xf32, #tpu.memory_space<vmem>>, vector<1x128xf32>
    tpu.vector_store %arg8[%406, %c0_172], %403 {strides = array<i32>} : memref<16x128xf32, #tpu.memory_space<vmem>>, vector<1x128xf32>,
    %c11_i32 = arith.constant 11 : i32
    %c15_i32_173 = arith.constant 15 : i32
    %408 = arith.subi %c15_i32_173, %c11_i32 : i32
    %409 = arith.mulf %377, %0 : vector<1x128xf32>
    %410 = arith.addf %409, %2 : vector<1x128xf32>
    %411 = arith.index_cast %408 : i32 to index
    %c0_174 = arith.constant 0 : index
    %412 = vector.load %arg1[%411, %c0_174] : memref<16x128xf32, #tpu.memory_space<vmem>>, vector<1x128xf32>
    %413 = arith.addf %410, %412 : vector<1x128xf32>
    %cst_175 = arith.constant 0.000000e+00 : f32
    %414 = vector.broadcast %cst_175 : f32 to vector<1x128xf32>
    %415 = arith.maximumf %413, %414 : vector<1x128xf32>
    %416 = arith.mulf %384, %1 : vector<1x128xf32>
    %417 = arith.addf %416, %3 : vector<1x128xf32>
    %418 = arith.index_cast %c11_i32 : i32 to index
    %c0_176 = arith.constant 0 : index
    %419 = vector.load %arg1[%418, %c0_176] : memref<16x128xf32, #tpu.memory_space<vmem>>, vector<1x128xf32>
    %420 = arith.addf %417, %419 : vector<1x128xf32>
    %cst_177 = arith.constant 0.000000e+00 : f32
    %421 = vector.broadcast %cst_177 : f32 to vector<1x128xf32>
    %422 = arith.maximumf %420, %421 : vector<1x128xf32>
    %423 = arith.index_cast %408 : i32 to index
    %c0_178 = arith.constant 0 : index
    %424 = vector.load %arg5[%423, %c0_178] : memref<16x128xf32, #tpu.memory_space<vmem>>, vector<1x128xf32>
    tpu.vector_store %arg5[%423, %c0_178], %415 {strides = array<i32>} : memref<16x128xf32, #tpu.memory_space<vmem>>, vector<1x128xf32>,
    %425 = arith.index_cast %c11_i32 : i32 to index
    %c0_179 = arith.constant 0 : index
    %426 = vector.load %arg6[%425, %c0_179] : memref<16x128xf32, #tpu.memory_space<vmem>>, vector<1x128xf32>
    tpu.vector_store %arg6[%425, %c0_179], %422 {strides = array<i32>} : memref<16x128xf32, #tpu.memory_space<vmem>>, vector<1x128xf32>,
    %c15_i32_180 = arith.constant 15 : i32
    %427 = arith.subi %c15_i32_180, %c11_i32 : i32
    %428 = arith.mulf %396, %4 : vector<1x128xf32>
    %429 = arith.addf %428, %6 : vector<1x128xf32>
    %430 = arith.index_cast %427 : i32 to index
    %c0_181 = arith.constant 0 : index
    %431 = vector.load %arg2[%430, %c0_181] : memref<16x128xf32, #tpu.memory_space<vmem>>, vector<1x128xf32>
    %432 = arith.addf %429, %431 : vector<1x128xf32>
    %cst_182 = arith.constant 0.000000e+00 : f32
    %433 = vector.broadcast %cst_182 : f32 to vector<1x128xf32>
    %434 = arith.maximumf %432, %433 : vector<1x128xf32>
    %435 = arith.mulf %403, %5 : vector<1x128xf32>
    %436 = arith.addf %435, %7 : vector<1x128xf32>
    %437 = arith.index_cast %c11_i32 : i32 to index
    %c0_183 = arith.constant 0 : index
    %438 = vector.load %arg2[%437, %c0_183] : memref<16x128xf32, #tpu.memory_space<vmem>>, vector<1x128xf32>
    %439 = arith.addf %436, %438 : vector<1x128xf32>
    %cst_184 = arith.constant 0.000000e+00 : f32
    %440 = vector.broadcast %cst_184 : f32 to vector<1x128xf32>
    %441 = arith.maximumf %439, %440 : vector<1x128xf32>
    %442 = arith.index_cast %427 : i32 to index
    %c0_185 = arith.constant 0 : index
    %443 = vector.load %arg7[%442, %c0_185] : memref<16x128xf32, #tpu.memory_space<vmem>>, vector<1x128xf32>
    tpu.vector_store %arg7[%442, %c0_185], %434 {strides = array<i32>} : memref<16x128xf32, #tpu.memory_space<vmem>>, vector<1x128xf32>,
    %444 = arith.index_cast %c11_i32 : i32 to index
    %c0_186 = arith.constant 0 : index
    %445 = vector.load %arg8[%444, %c0_186] : memref<16x128xf32, #tpu.memory_space<vmem>>, vector<1x128xf32>
    tpu.vector_store %arg8[%444, %c0_186], %441 {strides = array<i32>} : memref<16x128xf32, #tpu.memory_space<vmem>>, vector<1x128xf32>,
    %c12_i32 = arith.constant 12 : i32
    %c15_i32_187 = arith.constant 15 : i32
    %446 = arith.subi %c15_i32_187, %c12_i32 : i32
    %447 = arith.mulf %415, %0 : vector<1x128xf32>
    %448 = arith.addf %447, %2 : vector<1x128xf32>
    %449 = arith.index_cast %446 : i32 to index
    %c0_188 = arith.constant 0 : index
    %450 = vector.load %arg1[%449, %c0_188] : memref<16x128xf32, #tpu.memory_space<vmem>>, vector<1x128xf32>
    %451 = arith.addf %448, %450 : vector<1x128xf32>
    %cst_189 = arith.constant 0.000000e+00 : f32
    %452 = vector.broadcast %cst_189 : f32 to vector<1x128xf32>
    %453 = arith.maximumf %451, %452 : vector<1x128xf32>
    %454 = arith.mulf %422, %1 : vector<1x128xf32>
    %455 = arith.addf %454, %3 : vector<1x128xf32>
    %456 = arith.index_cast %c12_i32 : i32 to index
    %c0_190 = arith.constant 0 : index
    %457 = vector.load %arg1[%456, %c0_190] : memref<16x128xf32, #tpu.memory_space<vmem>>, vector<1x128xf32>
    %458 = arith.addf %455, %457 : vector<1x128xf32>
    %cst_191 = arith.constant 0.000000e+00 : f32
    %459 = vector.broadcast %cst_191 : f32 to vector<1x128xf32>
    %460 = arith.maximumf %458, %459 : vector<1x128xf32>
    %461 = arith.index_cast %446 : i32 to index
    %c0_192 = arith.constant 0 : index
    %462 = vector.load %arg5[%461, %c0_192] : memref<16x128xf32, #tpu.memory_space<vmem>>, vector<1x128xf32>
    tpu.vector_store %arg5[%461, %c0_192], %453 {strides = array<i32>} : memref<16x128xf32, #tpu.memory_space<vmem>>, vector<1x128xf32>,
    %463 = arith.index_cast %c12_i32 : i32 to index
    %c0_193 = arith.constant 0 : index
    %464 = vector.load %arg6[%463, %c0_193] : memref<16x128xf32, #tpu.memory_space<vmem>>, vector<1x128xf32>
    tpu.vector_store %arg6[%463, %c0_193], %460 {strides = array<i32>} : memref<16x128xf32, #tpu.memory_space<vmem>>, vector<1x128xf32>,
    %c15_i32_194 = arith.constant 15 : i32
    %465 = arith.subi %c15_i32_194, %c12_i32 : i32
    %466 = arith.mulf %434, %4 : vector<1x128xf32>
    %467 = arith.addf %466, %6 : vector<1x128xf32>
    %468 = arith.index_cast %465 : i32 to index
    %c0_195 = arith.constant 0 : index
    %469 = vector.load %arg2[%468, %c0_195] : memref<16x128xf32, #tpu.memory_space<vmem>>, vector<1x128xf32>
    %470 = arith.addf %467, %469 : vector<1x128xf32>
    %cst_196 = arith.constant 0.000000e+00 : f32
    %471 = vector.broadcast %cst_196 : f32 to vector<1x128xf32>
    %472 = arith.maximumf %470, %471 : vector<1x128xf32>
    %473 = arith.mulf %441, %5 : vector<1x128xf32>
    %474 = arith.addf %473, %7 : vector<1x128xf32>
    %475 = arith.index_cast %c12_i32 : i32 to index
    %c0_197 = arith.constant 0 : index
    %476 = vector.load %arg2[%475, %c0_197] : memref<16x128xf32, #tpu.memory_space<vmem>>, vector<1x128xf32>
    %477 = arith.addf %474, %476 : vector<1x128xf32>
    %cst_198 = arith.constant 0.000000e+00 : f32
    %478 = vector.broadcast %cst_198 : f32 to vector<1x128xf32>
    %479 = arith.maximumf %477, %478 : vector<1x128xf32>
    %480 = arith.index_cast %465 : i32 to index
    %c0_199 = arith.constant 0 : index
    %481 = vector.load %arg7[%480, %c0_199] : memref<16x128xf32, #tpu.memory_space<vmem>>, vector<1x128xf32>
    tpu.vector_store %arg7[%480, %c0_199], %472 {strides = array<i32>} : memref<16x128xf32, #tpu.memory_space<vmem>>, vector<1x128xf32>,
    %482 = arith.index_cast %c12_i32 : i32 to index
    %c0_200 = arith.constant 0 : index
    %483 = vector.load %arg8[%482, %c0_200] : memref<16x128xf32, #tpu.memory_space<vmem>>, vector<1x128xf32>
    tpu.vector_store %arg8[%482, %c0_200], %479 {strides = array<i32>} : memref<16x128xf32, #tpu.memory_space<vmem>>, vector<1x128xf32>,
    %c13_i32 = arith.constant 13 : i32
    %c15_i32_201 = arith.constant 15 : i32
    %484 = arith.subi %c15_i32_201, %c13_i32 : i32
    %485 = arith.mulf %453, %0 : vector<1x128xf32>
    %486 = arith.addf %485, %2 : vector<1x128xf32>
    %487 = arith.index_cast %484 : i32 to index
    %c0_202 = arith.constant 0 : index
    %488 = vector.load %arg1[%487, %c0_202] : memref<16x128xf32, #tpu.memory_space<vmem>>, vector<1x128xf32>
    %489 = arith.addf %486, %488 : vector<1x128xf32>
    %cst_203 = arith.constant 0.000000e+00 : f32
    %490 = vector.broadcast %cst_203 : f32 to vector<1x128xf32>
    %491 = arith.maximumf %489, %490 : vector<1x128xf32>
    %492 = arith.mulf %460, %1 : vector<1x128xf32>
    %493 = arith.addf %492, %3 : vector<1x128xf32>
    %494 = arith.index_cast %c13_i32 : i32 to index
    %c0_204 = arith.constant 0 : index
    %495 = vector.load %arg1[%494, %c0_204] : memref<16x128xf32, #tpu.memory_space<vmem>>, vector<1x128xf32>
    %496 = arith.addf %493, %495 : vector<1x128xf32>
    %cst_205 = arith.constant 0.000000e+00 : f32
    %497 = vector.broadcast %cst_205 : f32 to vector<1x128xf32>
    %498 = arith.maximumf %496, %497 : vector<1x128xf32>
    %499 = arith.index_cast %484 : i32 to index
    %c0_206 = arith.constant 0 : index
    %500 = vector.load %arg5[%499, %c0_206] : memref<16x128xf32, #tpu.memory_space<vmem>>, vector<1x128xf32>
    tpu.vector_store %arg5[%499, %c0_206], %491 {strides = array<i32>} : memref<16x128xf32, #tpu.memory_space<vmem>>, vector<1x128xf32>,
    %501 = arith.index_cast %c13_i32 : i32 to index
    %c0_207 = arith.constant 0 : index
    %502 = vector.load %arg6[%501, %c0_207] : memref<16x128xf32, #tpu.memory_space<vmem>>, vector<1x128xf32>
    tpu.vector_store %arg6[%501, %c0_207], %498 {strides = array<i32>} : memref<16x128xf32, #tpu.memory_space<vmem>>, vector<1x128xf32>,
    %c15_i32_208 = arith.constant 15 : i32
    %503 = arith.subi %c15_i32_208, %c13_i32 : i32
    %504 = arith.mulf %472, %4 : vector<1x128xf32>
    %505 = arith.addf %504, %6 : vector<1x128xf32>
    %506 = arith.index_cast %503 : i32 to index
    %c0_209 = arith.constant 0 : index
    %507 = vector.load %arg2[%506, %c0_209] : memref<16x128xf32, #tpu.memory_space<vmem>>, vector<1x128xf32>
    %508 = arith.addf %505, %507 : vector<1x128xf32>
    %cst_210 = arith.constant 0.000000e+00 : f32
    %509 = vector.broadcast %cst_210 : f32 to vector<1x128xf32>
    %510 = arith.maximumf %508, %509 : vector<1x128xf32>
    %511 = arith.mulf %479, %5 : vector<1x128xf32>
    %512 = arith.addf %511, %7 : vector<1x128xf32>
    %513 = arith.index_cast %c13_i32 : i32 to index
    %c0_211 = arith.constant 0 : index
    %514 = vector.load %arg2[%513, %c0_211] : memref<16x128xf32, #tpu.memory_space<vmem>>, vector<1x128xf32>
    %515 = arith.addf %512, %514 : vector<1x128xf32>
    %cst_212 = arith.constant 0.000000e+00 : f32
    %516 = vector.broadcast %cst_212 : f32 to vector<1x128xf32>
    %517 = arith.maximumf %515, %516 : vector<1x128xf32>
    %518 = arith.index_cast %503 : i32 to index
    %c0_213 = arith.constant 0 : index
    %519 = vector.load %arg7[%518, %c0_213] : memref<16x128xf32, #tpu.memory_space<vmem>>, vector<1x128xf32>
    tpu.vector_store %arg7[%518, %c0_213], %510 {strides = array<i32>} : memref<16x128xf32, #tpu.memory_space<vmem>>, vector<1x128xf32>,
    %520 = arith.index_cast %c13_i32 : i32 to index
    %c0_214 = arith.constant 0 : index
    %521 = vector.load %arg8[%520, %c0_214] : memref<16x128xf32, #tpu.memory_space<vmem>>, vector<1x128xf32>
    tpu.vector_store %arg8[%520, %c0_214], %517 {strides = array<i32>} : memref<16x128xf32, #tpu.memory_space<vmem>>, vector<1x128xf32>,
    %c14_i32 = arith.constant 14 : i32
    %c15_i32_215 = arith.constant 15 : i32
    %522 = arith.subi %c15_i32_215, %c14_i32 : i32
    %523 = arith.mulf %491, %0 : vector<1x128xf32>
    %524 = arith.addf %523, %2 : vector<1x128xf32>
    %525 = arith.index_cast %522 : i32 to index
    %c0_216 = arith.constant 0 : index
    %526 = vector.load %arg1[%525, %c0_216] : memref<16x128xf32, #tpu.memory_space<vmem>>, vector<1x128xf32>
    %527 = arith.addf %524, %526 : vector<1x128xf32>
    %cst_217 = arith.constant 0.000000e+00 : f32
    %528 = vector.broadcast %cst_217 : f32 to vector<1x128xf32>
    %529 = arith.maximumf %527, %528 : vector<1x128xf32>
    %530 = arith.mulf %498, %1 : vector<1x128xf32>
    %531 = arith.addf %530, %3 : vector<1x128xf32>
    %532 = arith.index_cast %c14_i32 : i32 to index
    %c0_218 = arith.constant 0 : index
    %533 = vector.load %arg1[%532, %c0_218] : memref<16x128xf32, #tpu.memory_space<vmem>>, vector<1x128xf32>
    %534 = arith.addf %531, %533 : vector<1x128xf32>
    %cst_219 = arith.constant 0.000000e+00 : f32
    %535 = vector.broadcast %cst_219 : f32 to vector<1x128xf32>
    %536 = arith.maximumf %534, %535 : vector<1x128xf32>
    %537 = arith.index_cast %522 : i32 to index
    %c0_220 = arith.constant 0 : index
    %538 = vector.load %arg5[%537, %c0_220] : memref<16x128xf32, #tpu.memory_space<vmem>>, vector<1x128xf32>
    tpu.vector_store %arg5[%537, %c0_220], %529 {strides = array<i32>} : memref<16x128xf32, #tpu.memory_space<vmem>>, vector<1x128xf32>,
    %539 = arith.index_cast %c14_i32 : i32 to index
    %c0_221 = arith.constant 0 : index
    %540 = vector.load %arg6[%539, %c0_221] : memref<16x128xf32, #tpu.memory_space<vmem>>, vector<1x128xf32>
    tpu.vector_store %arg6[%539, %c0_221], %536 {strides = array<i32>} : memref<16x128xf32, #tpu.memory_space<vmem>>, vector<1x128xf32>,
    %c15_i32_222 = arith.constant 15 : i32
    %541 = arith.subi %c15_i32_222, %c14_i32 : i32
    %542 = arith.mulf %510, %4 : vector<1x128xf32>
    %543 = arith.addf %542, %6 : vector<1x128xf32>
    %544 = arith.index_cast %541 : i32 to index
    %c0_223 = arith.constant 0 : index
    %545 = vector.load %arg2[%544, %c0_223] : memref<16x128xf32, #tpu.memory_space<vmem>>, vector<1x128xf32>
    %546 = arith.addf %543, %545 : vector<1x128xf32>
    %cst_224 = arith.constant 0.000000e+00 : f32
    %547 = vector.broadcast %cst_224 : f32 to vector<1x128xf32>
    %548 = arith.maximumf %546, %547 : vector<1x128xf32>
    %549 = arith.mulf %517, %5 : vector<1x128xf32>
    %550 = arith.addf %549, %7 : vector<1x128xf32>
    %551 = arith.index_cast %c14_i32 : i32 to index
    %c0_225 = arith.constant 0 : index
    %552 = vector.load %arg2[%551, %c0_225] : memref<16x128xf32, #tpu.memory_space<vmem>>, vector<1x128xf32>
    %553 = arith.addf %550, %552 : vector<1x128xf32>
    %cst_226 = arith.constant 0.000000e+00 : f32
    %554 = vector.broadcast %cst_226 : f32 to vector<1x128xf32>
    %555 = arith.maximumf %553, %554 : vector<1x128xf32>
    %556 = arith.index_cast %541 : i32 to index
    %c0_227 = arith.constant 0 : index
    %557 = vector.load %arg7[%556, %c0_227] : memref<16x128xf32, #tpu.memory_space<vmem>>, vector<1x128xf32>
    tpu.vector_store %arg7[%556, %c0_227], %548 {strides = array<i32>} : memref<16x128xf32, #tpu.memory_space<vmem>>, vector<1x128xf32>,
    %558 = arith.index_cast %c14_i32 : i32 to index
    %c0_228 = arith.constant 0 : index
    %559 = vector.load %arg8[%558, %c0_228] : memref<16x128xf32, #tpu.memory_space<vmem>>, vector<1x128xf32>
    tpu.vector_store %arg8[%558, %c0_228], %555 {strides = array<i32>} : memref<16x128xf32, #tpu.memory_space<vmem>>, vector<1x128xf32>,
    %c15_i32_229 = arith.constant 15 : i32
    %c15_i32_230 = arith.constant 15 : i32
    %560 = arith.subi %c15_i32_230, %c15_i32_229 : i32
    %561 = arith.mulf %529, %0 : vector<1x128xf32>
    %562 = arith.addf %561, %2 : vector<1x128xf32>
    %563 = arith.index_cast %560 : i32 to index
    %c0_231 = arith.constant 0 : index
    %564 = vector.load %arg1[%563, %c0_231] : memref<16x128xf32, #tpu.memory_space<vmem>>, vector<1x128xf32>
    %565 = arith.addf %562, %564 : vector<1x128xf32>
    %cst_232 = arith.constant 0.000000e+00 : f32
    %566 = vector.broadcast %cst_232 : f32 to vector<1x128xf32>
    %567 = arith.maximumf %565, %566 : vector<1x128xf32>
    %568 = arith.mulf %536, %1 : vector<1x128xf32>
    %569 = arith.addf %568, %3 : vector<1x128xf32>
    %570 = arith.index_cast %c15_i32_229 : i32 to index
    %c0_233 = arith.constant 0 : index
    %571 = vector.load %arg1[%570, %c0_233] : memref<16x128xf32, #tpu.memory_space<vmem>>, vector<1x128xf32>
    %572 = arith.addf %569, %571 : vector<1x128xf32>
    %cst_234 = arith.constant 0.000000e+00 : f32
    %573 = vector.broadcast %cst_234 : f32 to vector<1x128xf32>
    %574 = arith.maximumf %572, %573 : vector<1x128xf32>
    %575 = arith.index_cast %560 : i32 to index
    %c0_235 = arith.constant 0 : index
    %576 = vector.load %arg5[%575, %c0_235] : memref<16x128xf32, #tpu.memory_space<vmem>>, vector<1x128xf32>
    tpu.vector_store %arg5[%575, %c0_235], %567 {strides = array<i32>} : memref<16x128xf32, #tpu.memory_space<vmem>>, vector<1x128xf32>,
    %577 = arith.index_cast %c15_i32_229 : i32 to index
    %c0_236 = arith.constant 0 : index
    %578 = vector.load %arg6[%577, %c0_236] : memref<16x128xf32, #tpu.memory_space<vmem>>, vector<1x128xf32>
    tpu.vector_store %arg6[%577, %c0_236], %574 {strides = array<i32>} : memref<16x128xf32, #tpu.memory_space<vmem>>, vector<1x128xf32>,
    %c15_i32_237 = arith.constant 15 : i32
    %579 = arith.subi %c15_i32_237, %c15_i32_229 : i32
    %580 = arith.mulf %548, %4 : vector<1x128xf32>
    %581 = arith.addf %580, %6 : vector<1x128xf32>
    %582 = arith.index_cast %579 : i32 to index
    %c0_238 = arith.constant 0 : index
    %583 = vector.load %arg2[%582, %c0_238] : memref<16x128xf32, #tpu.memory_space<vmem>>, vector<1x128xf32>
    %584 = arith.addf %581, %583 : vector<1x128xf32>
    %cst_239 = arith.constant 0.000000e+00 : f32
    %585 = vector.broadcast %cst_239 : f32 to vector<1x128xf32>
    %586 = arith.maximumf %584, %585 : vector<1x128xf32>
    %587 = arith.mulf %555, %5 : vector<1x128xf32>
    %588 = arith.addf %587, %7 : vector<1x128xf32>
    %589 = arith.index_cast %c15_i32_229 : i32 to index
    %c0_240 = arith.constant 0 : index
    %590 = vector.load %arg2[%589, %c0_240] : memref<16x128xf32, #tpu.memory_space<vmem>>, vector<1x128xf32>
    %591 = arith.addf %588, %590 : vector<1x128xf32>
    %cst_241 = arith.constant 0.000000e+00 : f32
    %592 = vector.broadcast %cst_241 : f32 to vector<1x128xf32>
    %593 = arith.maximumf %591, %592 : vector<1x128xf32>
    %594 = arith.index_cast %579 : i32 to index
    %c0_242 = arith.constant 0 : index
    %595 = vector.load %arg7[%594, %c0_242] : memref<16x128xf32, #tpu.memory_space<vmem>>, vector<1x128xf32>
    tpu.vector_store %arg7[%594, %c0_242], %586 {strides = array<i32>} : memref<16x128xf32, #tpu.memory_space<vmem>>, vector<1x128xf32>,
    %596 = arith.index_cast %c15_i32_229 : i32 to index
    %c0_243 = arith.constant 0 : index
    %597 = vector.load %arg8[%596, %c0_243] : memref<16x128xf32, #tpu.memory_space<vmem>>, vector<1x128xf32>
    tpu.vector_store %arg8[%596, %c0_243], %593 {strides = array<i32>} : memref<16x128xf32, #tpu.memory_space<vmem>>, vector<1x128xf32>,
    %c15_i32_244 = arith.constant 15 : i32
    return
  }
  func.func @transform_0(%arg0: i32) -> (i32, i32) {
    %c0_i32 = arith.constant 0 : i32
    %c0_i32_0 = arith.constant 0 : i32
    return %c0_i32, %arg0 : i32, i32
  }
  func.func @transform_1(%arg0: i32) -> (i32, i32) {
    %c0_i32 = arith.constant 0 : i32
    %c0_i32_0 = arith.constant 0 : i32
    return %c0_i32, %arg0 : i32, i32
  }
  func.func @transform_2(%arg0: i32) -> (i32, i32) {
    %c0_i32 = arith.constant 0 : i32
    %c0_i32_0 = arith.constant 0 : i32
    return %c0_i32, %arg0 : i32, i32
  }
  func.func @transform_3(%arg0: i32) -> (i32, i32) {
    %c0_i32 = arith.constant 0 : i32
    %c0_i32_0 = arith.constant 0 : i32
    return %c0_i32, %arg0 : i32, i32
  }
  func.func @transform_4(%arg0: i32) -> (i32, i32) {
    %c0_i32 = arith.constant 0 : i32
    %c0_i32_0 = arith.constant 0 : i32
    return %c0_i32, %arg0 : i32, i32
  }
  func.func @transform_5(%arg0: i32) -> (i32, i32) {
    %c0_i32 = arith.constant 0 : i32
    %c0_i32_0 = arith.constant 0 : i32
    return %c0_i32, %arg0 : i32, i32
  }
  func.func @transform_6(%arg0: i32) -> (i32, i32) {
    %c0_i32 = arith.constant 0 : i32
    %c0_i32_0 = arith.constant 0 : i32
    return %c0_i32, %arg0 : i32, i32
  }
  func.func @transform_7(%arg0: i32) -> (i32, i32) {
    %c0_i32 = arith.constant 0 : i32
    %c0_i32_0 = arith.constant 0 : i32
    return %c0_i32, %arg0 : i32, i32
  }
}

</mosaic_0001>

<llo_original>
// kernel: tpu_custom_call.1
$region0: #{tpu_custom_call.1}
  #allocation0 [shape = 'u32[]', space=smem, size = 0x4, offset = 0x4, fixed_abs, tag = 'smem constant byte address 0x4 - core index']
  #allocation1 [shape = 'u32[144,128]{1,0:T(1,128)}', space=vmem, size = 0x12000, scoped, tag = 'internal scratch']
  %s0 = inlined_call_operand.hbm [shape: f32[16,128], index: 0, kind: input, shape index: {}]
  %s1 = inlined_call_operand.hbm [shape: f32[16,128], index: 1, kind: input, shape index: {}]
  %s2 = inlined_call_operand.hbm [shape: f32[4,128], index: 2, kind: input, shape index: {}]
  %s3 = inlined_call_operand.vmem [shape: f32[4,128], index: 3, kind: input, shape index: {}]
  %s4 = inlined_call_operand.hbm [shape: f32[16,128], index: 4, kind: output, shape index: {0}]
  %s5 = inlined_call_operand.hbm [shape: f32[16,128], index: 5, kind: output, shape index: {1}]
  %s6 = inlined_call_operand.hbm [shape: f32[16,128], index: 6, kind: output, shape index: {2}]
  %s7 = inlined_call_operand.hbm [shape: f32[16,128], index: 7, kind: output, shape index: {3}]
  %8 = xla_tuple %s4, %s5, %s6, %s7
  %s9 = sld [smem:[#allocation0]]
  $region62: #{tpu_custom_call.1} parent=0
    _
  %s11 = ssub.s32 1, %s9
  %s12 = scalar_select 0, %s11, %s9
  $region1: #{tpu_custom_call.1} parent=0
    #allocation2 [shape = 'u8[8192]{0}', space=vmem, size = 0x2000, scoped, tag = 'input window, operand 0, single buffered']
    #allocation3 [shape = 's32[1]{0}', space=sflag, size = 0x4, scoped, tag = 'scoped memory for tpu_custom_call.1']
    #allocation4 [shape = 's32[1]{0}', space=sflag, size = 0x4, scoped, tag = 'scoped memory for tpu_custom_call.1']
    #allocation5 [shape = 'u8[8192]{0}', space=vmem, size = 0x2000, scoped, tag = 'input window, operand 1, single buffered']
    #allocation6 [shape = 's32[1]{0}', space=sflag, size = 0x4, scoped, tag = 'scoped memory for tpu_custom_call.1']
    #allocation7 [shape = 'u8[2048]{0}', space=vmem, size = 0x800, scoped, tag = 'input window, operand 2, single buffered']
    #allocation8 [shape = 'u8[8192]{0}', space=vmem, size = 0x2000, scoped, tag = 'output window, operand 0, single buffered']
    #allocation9 [shape = 'u8[8192]{0}', space=vmem, size = 0x2000, scoped, tag = 'output window, operand 1, single buffered']
    #allocation10 [shape = 's32[1]{0}', space=sflag, size = 0x4, scoped, tag = 'scoped memory for tpu_custom_call.1']
    #allocation11 [shape = 'u8[8192]{0}', space=vmem, size = 0x2000, scoped, tag = 'output window, operand 2, single buffered']
    #allocation12 [shape = 'u8[8192]{0}', space=vmem, size = 0x2000, scoped, tag = 'output window, operand 3, single buffered']
    #allocation13 [shape = 's32[1]{0}', space=sflag, size = 0x4, scoped, tag = 'scoped memory for tpu_custom_call.1']
    %13 = vsyncpa [#allocation3], 0
    %14 = vsyncpa [#allocation6], 0
    %15 = vsyncpa [#allocation4], 0
    %16 = vsyncpa [#allocation10], 0
    %17 = vsyncpa [#allocation13], 0
    // Predicated region
    $region2: #{tpu_custom_call.1} parent=1 // pred_check
      _
    $region3: #{tpu_custom_call.1} parent=1 // pred_check_branch
      %19 = sbr.rel (0) target = $region5
    $region4: #{tpu_custom_call.1} parent=1 // pred_region
      %s21 = ssub.s32 256, 256
      %22 = vsyncadd [#allocation3], %s21
      %s23 = sshll.u32 [#allocation2], 4
      %s24 = int_to_ptr.vmem [resolvable:$true] %s23
      %29 = dma.hbm_to_vmem [thread:$0]  %s0, 256, %s24, [#allocation3], 128, 128, 8
    $region5: #{tpu_custom_call.1} parent=1 // pred_fallthru
      _
    // Predicated region
    $region6: #{tpu_custom_call.1} parent=1 // pred_check
      _
    $region7: #{tpu_custom_call.1} parent=1 // pred_check_branch
      %31 = sbr.rel (0) target = $region9
    $region8: #{tpu_custom_call.1} parent=1 // pred_region
      %s33 = ssub.s32 256, 256
      %34 = vsyncadd [#allocation6], %s33
      %s35 = sshll.u32 [#allocation5], 4
      %s36 = int_to_ptr.vmem [resolvable:$true] %s35
      %41 = dma.hbm_to_vmem [thread:$0]  %s1, 256, %s36, [#allocation6], 128, 128, 8
    $region9: #{tpu_custom_call.1} parent=1 // pred_fallthru
      _
    // Predicated region
    $region10: #{tpu_custom_call.1} parent=1 // pred_check
      _
    $region11: #{tpu_custom_call.1} parent=1 // pred_check_branch
      %43 = sbr.rel (0) target = $region13
    $region12: #{tpu_custom_call.1} parent=1 // pred_region
      %s45 = ssub.s32 64, 64
      %46 = vsyncadd [#allocation6], %s45
      %s48 = sshll.u32 [#allocation7], 4
      %s49 = int_to_ptr.vmem [resolvable:$true] %s48
      %51 = dma.hbm_to_vmem [thread:$0]  %s2, 64, %s49, [#allocation6]
    $region13: #{tpu_custom_call.1} parent=1 // pred_fallthru
      _
    // Predicated region
    $region14: #{tpu_custom_call.1} parent=1 // pred_check
      _
    $region15: #{tpu_custom_call.1} parent=1 // pred_check_branch
      %53 = sbr.rel (0) target = $region17
    $region16: #{tpu_custom_call.1} parent=1 // pred_region
      _
    $region17: #{tpu_custom_call.1} parent=1 // pred_fallthru
      _
    // Predicated region
    $region18: #{tpu_custom_call.1} parent=1 // pred_check
      _
    $region19: #{tpu_custom_call.1} parent=1 // pred_check_branch
      %55 = sbr.rel (0) target = $region21
    $region20: #{tpu_custom_call.1} parent=1 // pred_region
      %56 = dma.done [#allocation3], 256
    $region21: #{tpu_custom_call.1} parent=1 // pred_fallthru
      _
    // Predicated region
    $region22: #{tpu_custom_call.1} parent=1 // pred_check
      _
    $region23: #{tpu_custom_call.1} parent=1 // pred_check_branch
      %58 = sbr.rel (0) target = $region25
    $region24: #{tpu_custom_call.1} parent=1 // pred_region
      %59 = dma.done [#allocation6], 256
    $region25: #{tpu_custom_call.1} parent=1 // pred_fallthru
      _
    // Predicated region
    $region26: #{tpu_custom_call.1} parent=1 // pred_check
      _
    $region27: #{tpu_custom_call.1} parent=1 // pred_check_branch
      %61 = sbr.rel (0) target = $region29
    $region28: #{tpu_custom_call.1} parent=1 // pred_region
      %62 = dma.done [#allocation6], 64
    $region29: #{tpu_custom_call.1} parent=1 // pred_fallthru
      _
    %v63 = vld [vmem:[#allocation7] sm:$0x1]
    %v64 = vld [vmem:[#allocation7 + $0x1] sm:$0x1]
    %v65 = vld [vmem:[#allocation7 + $0x2] sm:$0x1]
    %v66 = vld [vmem:[#allocation7 + $0x3] sm:$0x1]
    %v67 = vld [vmem:[%s3] sm:$0x1]
    %v68 = vld [vmem:[%s3 + $0x1] sm:$0x1]
    %v69 = vld [vmem:[%s3 + $0x2] sm:$0x1]
    %v70 = vld [vmem:[%s3 + $0x3] sm:$0x1]
    %71 = vst [vmem:[#allocation8 + $0xf] sm:$0x1] 0.0
    %72 = vst [vmem:[#allocation9] sm:$0x1] 0.0
    %73 = vst [vmem:[#allocation11 + $0xf] sm:$0x1] 0.0
    %74 = vst [vmem:[#allocation12] sm:$0x1] 0.0
    %v75 = vld [vmem:[#allocation2 + $0xf] sm:$0x1]
    %v76 = vmax.f32 %v75, 0.0
    %v77 = vld [vmem:[#allocation2] sm:$0x1]
    %v78 = vmax.f32 %v77, 0.0
    %v79 = vld [vmem:[#allocation5 + $0xf] sm:$0x1]
    %v80 = vmax.f32 %v79, 0.0
    %v81 = vld [vmem:[#allocation5] sm:$0x1]
    %v82 = vmax.f32 %v81, 0.0
    %v83 = vmul.f32 %v76, %v63
    %v84 = vadd.f32 %v83, %v65
    %v85 = vld [vmem:[#allocation2 + $0xe] sm:$0x1]
    %v86 = vadd.f32 %v84, %v85
    %v87 = vmax.f32 %v86, 0.0
    %v88 = vmul.f32 %v78, %v64
    %v89 = vadd.f32 %v88, %v66
    %v90 = vld [vmem:[#allocation2 + $0x1] sm:$0x1]
    %v91 = vadd.f32 %v89, %v90
    %v92 = vmax.f32 %v91, 0.0
    %93 = vst [vmem:[#allocation8 + $0xe] sm:$0x1] %v87
    %94 = vst [vmem:[#allocation9 + $0x1] sm:$0x1] %v92
    %v95 = vmul.f32 %v80, %v67
    %v96 = vadd.f32 %v95, %v69
    %v97 = vld [vmem:[#allocation5 + $0xe] sm:$0x1]
    %v98 = vadd.f32 %v96, %v97
    %v99 = vmax.f32 %v98, 0.0
    %v100 = vmul.f32 %v82, %v68
    %v101 = vadd.f32 %v100, %v70
    %v102 = vld [vmem:[#allocation5 + $0x1] sm:$0x1]
    %v103 = vadd.f32 %v101, %v102
    %v104 = vmax.f32 %v103, 0.0
    %105 = vst [vmem:[#allocation11 + $0xe] sm:$0x1] %v99
    %106 = vst [vmem:[#allocation12 + $0x1] sm:$0x1] %v104
    %v107 = vmul.f32 %v87, %v63
    %v108 = vadd.f32 %v107, %v65
    %v109 = vld [vmem:[#allocation2 + $0xd] sm:$0x1]
    %v110 = vadd.f32 %v108, %v109
    %v111 = vmax.f32 %v110, 0.0
    %v112 = vmul.f32 %v92, %v64
    %v113 = vadd.f32 %v112, %v66
    %v114 = vld [vmem:[#allocation2 + $0x2] sm:$0x1]
    %v115 = vadd.f32 %v113, %v114
    %v116 = vmax.f32 %v115, 0.0
    %117 = vst [vmem:[#allocation8 + $0xd] sm:$0x1] %v111
    %118 = vst [vmem:[#allocation9 + $0x2] sm:$0x1] %v116
    %v119 = vmul.f32 %v99, %v67
    %v120 = vadd.f32 %v119, %v69
    %v121 = vld [vmem:[#allocation5 + $0xd] sm:$0x1]
    %v122 = vadd.f32 %v120, %v121
    %v123 = vmax.f32 %v122, 0.0
    %v124 = vmul.f32 %v104, %v68
    %v125 = vadd.f32 %v124, %v70
    %v126 = vld [vmem:[#allocation5 + $0x2] sm:$0x1]
    %v127 = vadd.f32 %v125, %v126
    %v128 = vmax.f32 %v127, 0.0
    %129 = vst [vmem:[#allocation11 + $0xd] sm:$0x1] %v123
    %130 = vst [vmem:[#allocation12 + $0x2] sm:$0x1] %v128
    %v131 = vmul.f32 %v111, %v63
    %v132 = vadd.f32 %v131, %v65
    %v133 = vld [vmem:[#allocation2 + $0xc] sm:$0x1]
    %v134 = vadd.f32 %v132, %v133
    %v135 = vmax.f32 %v134, 0.0
    %v136 = vmul.f32 %v116, %v64
    %v137 = vadd.f32 %v136, %v66
    %v138 = vld [vmem:[#allocation2 + $0x3] sm:$0x1]
    %v139 = vadd.f32 %v137, %v138
    %v140 = vmax.f32 %v139, 0.0
    %141 = vst [vmem:[#allocation8 + $0xc] sm:$0x1] %v135
    %142 = vst [vmem:[#allocation9 + $0x3] sm:$0x1] %v140
    %v143 = vmul.f32 %v123, %v67
    %v144 = vadd.f32 %v143, %v69
    %v145 = vld [vmem:[#allocation5 + $0xc] sm:$0x1]
    %v146 = vadd.f32 %v144, %v145
    %v147 = vmax.f32 %v146, 0.0
    %v148 = vmul.f32 %v128, %v68
    %v149 = vadd.f32 %v148, %v70
    %v150 = vld [vmem:[#allocation5 + $0x3] sm:$0x1]
    %v151 = vadd.f32 %v149, %v150
    %v152 = vmax.f32 %v151, 0.0
    %153 = vst [vmem:[#allocation11 + $0xc] sm:$0x1] %v147
    %154 = vst [vmem:[#allocation12 + $0x3] sm:$0x1] %v152
    %v155 = vmul.f32 %v135, %v63
    %v156 = vadd.f32 %v155, %v65
    %v157 = vld [vmem:[#allocation2 + $0xb] sm:$0x1]
    %v158 = vadd.f32 %v156, %v157
    %v159 = vmax.f32 %v158, 0.0
    %v160 = vmul.f32 %v140, %v64
    %v161 = vadd.f32 %v160, %v66
    %v162 = vld [vmem:[#allocation2 + $0x4] sm:$0x1]
    %v163 = vadd.f32 %v161, %v162
    %v164 = vmax.f32 %v163, 0.0
    %165 = vst [vmem:[#allocation8 + $0xb] sm:$0x1] %v159
    %166 = vst [vmem:[#allocation9 + $0x4] sm:$0x1] %v164
    %v167 = vmul.f32 %v147, %v67
    %v168 = vadd.f32 %v167, %v69
    %v169 = vld [vmem:[#allocation5 + $0xb] sm:$0x1]
    %v170 = vadd.f32 %v168, %v169
    %v171 = vmax.f32 %v170, 0.0
    %v172 = vmul.f32 %v152, %v68
    %v173 = vadd.f32 %v172, %v70
    %v174 = vld [vmem:[#allocation5 + $0x4] sm:$0x1]
    %v175 = vadd.f32 %v173, %v174
    %v176 = vmax.f32 %v175, 0.0
    %177 = vst [vmem:[#allocation11 + $0xb] sm:$0x1] %v171
    %178 = vst [vmem:[#allocation12 + $0x4] sm:$0x1] %v176
    %v179 = vmul.f32 %v159, %v63
    %v180 = vadd.f32 %v179, %v65
    %v181 = vld [vmem:[#allocation2 + $0xa] sm:$0x1]
    %v182 = vadd.f32 %v180, %v181
    %v183 = vmax.f32 %v182, 0.0
    %v184 = vmul.f32 %v164, %v64
    %v185 = vadd.f32 %v184, %v66
    %v186 = vld [vmem:[#allocation2 + $0x5] sm:$0x1]
    %v187 = vadd.f32 %v185, %v186
    %v188 = vmax.f32 %v187, 0.0
    %189 = vst [vmem:[#allocation8 + $0xa] sm:$0x1] %v183
    %190 = vst [vmem:[#allocation9 + $0x5] sm:$0x1] %v188
    %v191 = vmul.f32 %v171, %v67
    %v192 = vadd.f32 %v191, %v69
    %v193 = vld [vmem:[#allocation5 + $0xa] sm:$0x1]
    %v194 = vadd.f32 %v192, %v193
    %v195 = vmax.f32 %v194, 0.0
    %v196 = vmul.f32 %v176, %v68
    %v197 = vadd.f32 %v196, %v70
    %v198 = vld [vmem:[#allocation5 + $0x5] sm:$0x1]
    %v199 = vadd.f32 %v197, %v198
    %v200 = vmax.f32 %v199, 0.0
    %201 = vst [vmem:[#allocation11 + $0xa] sm:$0x1] %v195
    %202 = vst [vmem:[#allocation12 + $0x5] sm:$0x1] %v200
    %v203 = vmul.f32 %v183, %v63
    %v204 = vadd.f32 %v203, %v65
    %v205 = vld [vmem:[#allocation2 + $0x9] sm:$0x1]
    %v206 = vadd.f32 %v204, %v205
    %v207 = vmax.f32 %v206, 0.0
    %v208 = vmul.f32 %v188, %v64
    %v209 = vadd.f32 %v208, %v66
    %v210 = vld [vmem:[#allocation2 + $0x6] sm:$0x1]
    %v211 = vadd.f32 %v209, %v210
    %v212 = vmax.f32 %v211, 0.0
    %213 = vst [vmem:[#allocation8 + $0x9] sm:$0x1] %v207
    %214 = vst [vmem:[#allocation9 + $0x6] sm:$0x1] %v212
    %v215 = vmul.f32 %v195, %v67
    %v216 = vadd.f32 %v215, %v69
    %v217 = vld [vmem:[#allocation5 + $0x9] sm:$0x1]
    %v218 = vadd.f32 %v216, %v217
    %v219 = vmax.f32 %v218, 0.0
    %v220 = vmul.f32 %v200, %v68
    %v221 = vadd.f32 %v220, %v70
    %v222 = vld [vmem:[#allocation5 + $0x6] sm:$0x1]
    %v223 = vadd.f32 %v221, %v222
    %v224 = vmax.f32 %v223, 0.0
    %225 = vst [vmem:[#allocation11 + $0x9] sm:$0x1] %v219
    %226 = vst [vmem:[#allocation12 + $0x6] sm:$0x1] %v224
    %v227 = vmul.f32 %v207, %v63
    %v228 = vadd.f32 %v227, %v65
    %v229 = vld [vmem:[#allocation2 + $0x8] sm:$0x1]
    %v230 = vadd.f32 %v228, %v229
    %v231 = vmax.f32 %v230, 0.0
    %v232 = vmul.f32 %v212, %v64
    %v233 = vadd.f32 %v232, %v66
    %v234 = vld [vmem:[#allocation2 + $0x7] sm:$0x1]
    %v235 = vadd.f32 %v233, %v234
    %v236 = vmax.f32 %v235, 0.0
    %237 = vst [vmem:[#allocation8 + $0x8] sm:$0x1] %v231
    %238 = vst [vmem:[#allocation9 + $0x7] sm:$0x1] %v236
    %v239 = vmul.f32 %v219, %v67
    %v240 = vadd.f32 %v239, %v69
    %v241 = vld [vmem:[#allocation5 + $0x8] sm:$0x1]
    %v242 = vadd.f32 %v240, %v241
    %v243 = vmax.f32 %v242, 0.0
    %v244 = vmul.f32 %v224, %v68
    %v245 = vadd.f32 %v244, %v70
    %v246 = vld [vmem:[#allocation5 + $0x7] sm:$0x1]
    %v247 = vadd.f32 %v245, %v246
    %v248 = vmax.f32 %v247, 0.0
    %249 = vst [vmem:[#allocation11 + $0x8] sm:$0x1] %v243
    %250 = vst [vmem:[#allocation12 + $0x7] sm:$0x1] %v248
    %v251 = vmul.f32 %v231, %v63
    %v252 = vadd.f32 %v251, %v65
    %v253 = vld [vmem:[#allocation2 + $0x7] sm:$0x1]
    %v254 = vadd.f32 %v252, %v253
    %v255 = vmax.f32 %v254, 0.0
    %v256 = vmul.f32 %v236, %v64
    %v257 = vadd.f32 %v256, %v66
    %v258 = vld [vmem:[#allocation2 + $0x8] sm:$0x1]
    %v259 = vadd.f32 %v257, %v258
    %v260 = vmax.f32 %v259, 0.0
    %261 = vst [vmem:[#allocation8 + $0x7] sm:$0x1] %v255
    %262 = vst [vmem:[#allocation9 + $0x8] sm:$0x1] %v260
    %v263 = vmul.f32 %v243, %v67
    %v264 = vadd.f32 %v263, %v69
    %v265 = vld [vmem:[#allocation5 + $0x7] sm:$0x1]
    %v266 = vadd.f32 %v264, %v265
    %v267 = vmax.f32 %v266, 0.0
    %v268 = vmul.f32 %v248, %v68
    %v269 = vadd.f32 %v268, %v70
    %v270 = vld [vmem:[#allocation5 + $0x8] sm:$0x1]
    %v271 = vadd.f32 %v269, %v270
    %v272 = vmax.f32 %v271, 0.0
    %273 = vst [vmem:[#allocation11 + $0x7] sm:$0x1] %v267
    %274 = vst [vmem:[#allocation12 + $0x8] sm:$0x1] %v272
    %v275 = vmul.f32 %v255, %v63
    %v276 = vadd.f32 %v275, %v65
    %v277 = vld [vmem:[#allocation2 + $0x6] sm:$0x1]
    %v278 = vadd.f32 %v276, %v277
    %v279 = vmax.f32 %v278, 0.0
    %v280 = vmul.f32 %v260, %v64
    %v281 = vadd.f32 %v280, %v66
    %v282 = vld [vmem:[#allocation2 + $0x9] sm:$0x1]
    %v283 = vadd.f32 %v281, %v282
    %v284 = vmax.f32 %v283, 0.0
    %285 = vst [vmem:[#allocation8 + $0x6] sm:$0x1] %v279
    %286 = vst [vmem:[#allocation9 + $0x9] sm:$0x1] %v284
    %v287 = vmul.f32 %v267, %v67
    %v288 = vadd.f32 %v287, %v69
    %v289 = vld [vmem:[#allocation5 + $0x6] sm:$0x1]
    %v290 = vadd.f32 %v288, %v289
    %v291 = vmax.f32 %v290, 0.0
    %v292 = vmul.f32 %v272, %v68
    %v293 = vadd.f32 %v292, %v70
    %v294 = vld [vmem:[#allocation5 + $0x9] sm:$0x1]
    %v295 = vadd.f32 %v293, %v294
    %v296 = vmax.f32 %v295, 0.0
    %297 = vst [vmem:[#allocation11 + $0x6] sm:$0x1] %v291
    %298 = vst [vmem:[#allocation12 + $0x9] sm:$0x1] %v296
    %v299 = vmul.f32 %v279, %v63
    %v300 = vadd.f32 %v299, %v65
    %v301 = vld [vmem:[#allocation2 + $0x5] sm:$0x1]
    %v302 = vadd.f32 %v300, %v301
    %v303 = vmax.f32 %v302, 0.0
    %v304 = vmul.f32 %v284, %v64
    %v305 = vadd.f32 %v304, %v66
    %v306 = vld [vmem:[#allocation2 + $0xa] sm:$0x1]
    %v307 = vadd.f32 %v305, %v306
    %v308 = vmax.f32 %v307, 0.0
    %309 = vst [vmem:[#allocation8 + $0x5] sm:$0x1] %v303
    %310 = vst [vmem:[#allocation9 + $0xa] sm:$0x1] %v308
    %v311 = vmul.f32 %v291, %v67
    %v312 = vadd.f32 %v311, %v69
    %v313 = vld [vmem:[#allocation5 + $0x5] sm:$0x1]
    %v314 = vadd.f32 %v312, %v313
    %v315 = vmax.f32 %v314, 0.0
    %v316 = vmul.f32 %v296, %v68
    %v317 = vadd.f32 %v316, %v70
    %v318 = vld [vmem:[#allocation5 + $0xa] sm:$0x1]
    %v319 = vadd.f32 %v317, %v318
    %v320 = vmax.f32 %v319, 0.0
    %321 = vst [vmem:[#allocation11 + $0x5] sm:$0x1] %v315
    %322 = vst [vmem:[#allocation12 + $0xa] sm:$0x1] %v320
    %v323 = vmul.f32 %v303, %v63
    %v324 = vadd.f32 %v323, %v65
    %v325 = vld [vmem:[#allocation2 + $0x4] sm:$0x1]
    %v326 = vadd.f32 %v324, %v325
    %v327 = vmax.f32 %v326, 0.0
    %v328 = vmul.f32 %v308, %v64
    %v329 = vadd.f32 %v328, %v66
    %v330 = vld [vmem:[#allocation2 + $0xb] sm:$0x1]
    %v331 = vadd.f32 %v329, %v330
    %v332 = vmax.f32 %v331, 0.0
    %333 = vst [vmem:[#allocation8 + $0x4] sm:$0x1] %v327
    %334 = vst [vmem:[#allocation9 + $0xb] sm:$0x1] %v332
    %v335 = vmul.f32 %v315, %v67
    %v336 = vadd.f32 %v335, %v69
    %v337 = vld [vmem:[#allocation5 + $0x4] sm:$0x1]
    %v338 = vadd.f32 %v336, %v337
    %v339 = vmax.f32 %v338, 0.0
    %v340 = vmul.f32 %v320, %v68
    %v341 = vadd.f32 %v340, %v70
    %v342 = vld [vmem:[#allocation5 + $0xb] sm:$0x1]
    %v343 = vadd.f32 %v341, %v342
    %v344 = vmax.f32 %v343, 0.0
    %345 = vst [vmem:[#allocation11 + $0x4] sm:$0x1] %v339
    %346 = vst [vmem:[#allocation12 + $0xb] sm:$0x1] %v344
    %v347 = vmul.f32 %v327, %v63
    %v348 = vadd.f32 %v347, %v65
    %v349 = vld [vmem:[#allocation2 + $0x3] sm:$0x1]
    %v350 = vadd.f32 %v348, %v349
    %v351 = vmax.f32 %v350, 0.0
    %v352 = vmul.f32 %v332, %v64
    %v353 = vadd.f32 %v352, %v66
    %v354 = vld [vmem:[#allocation2 + $0xc] sm:$0x1]
    %v355 = vadd.f32 %v353, %v354
    %v356 = vmax.f32 %v355, 0.0
    %357 = vst [vmem:[#allocation8 + $0x3] sm:$0x1] %v351
    %358 = vst [vmem:[#allocation9 + $0xc] sm:$0x1] %v356
    %v359 = vmul.f32 %v339, %v67
    %v360 = vadd.f32 %v359, %v69
    %v361 = vld [vmem:[#allocation5 + $0x3] sm:$0x1]
    %v362 = vadd.f32 %v360, %v361
    %v363 = vmax.f32 %v362, 0.0
    %v364 = vmul.f32 %v344, %v68
    %v365 = vadd.f32 %v364, %v70
    %v366 = vld [vmem:[#allocation5 + $0xc] sm:$0x1]
    %v367 = vadd.f32 %v365, %v366
    %v368 = vmax.f32 %v367, 0.0
    %369 = vst [vmem:[#allocation11 + $0x3] sm:$0x1] %v363
    %370 = vst [vmem:[#allocation12 + $0xc] sm:$0x1] %v368
    %v371 = vmul.f32 %v351, %v63
    %v372 = vadd.f32 %v371, %v65
    %v373 = vld [vmem:[#allocation2 + $0x2] sm:$0x1]
    %v374 = vadd.f32 %v372, %v373
    %v375 = vmax.f32 %v374, 0.0
    %v376 = vmul.f32 %v356, %v64
    %v377 = vadd.f32 %v376, %v66
    %v378 = vld [vmem:[#allocation2 + $0xd] sm:$0x1]
    %v379 = vadd.f32 %v377, %v378
    %v380 = vmax.f32 %v379, 0.0
    %381 = vst [vmem:[#allocation8 + $0x2] sm:$0x1] %v375
    %382 = vst [vmem:[#allocation9 + $0xd] sm:$0x1] %v380
    %v383 = vmul.f32 %v363, %v67
    %v384 = vadd.f32 %v383, %v69
    %v385 = vld [vmem:[#allocation5 + $0x2] sm:$0x1]
    %v386 = vadd.f32 %v384, %v385
    %v387 = vmax.f32 %v386, 0.0
    %v388 = vmul.f32 %v368, %v68
    %v389 = vadd.f32 %v388, %v70
    %v390 = vld [vmem:[#allocation5 + $0xd] sm:$0x1]
    %v391 = vadd.f32 %v389, %v390
    %v392 = vmax.f32 %v391, 0.0
    %393 = vst [vmem:[#allocation11 + $0x2] sm:$0x1] %v387
    %394 = vst [vmem:[#allocation12 + $0xd] sm:$0x1] %v392
    %v395 = vmul.f32 %v375, %v63
    %v396 = vadd.f32 %v395, %v65
    %v397 = vld [vmem:[#allocation2 + $0x1] sm:$0x1]
    %v398 = vadd.f32 %v396, %v397
    %v399 = vmax.f32 %v398, 0.0
    %v400 = vmul.f32 %v380, %v64
    %v401 = vadd.f32 %v400, %v66
    %v402 = vld [vmem:[#allocation2 + $0xe] sm:$0x1]
    %v403 = vadd.f32 %v401, %v402
    %v404 = vmax.f32 %v403, 0.0
    %405 = vst [vmem:[#allocation8 + $0x1] sm:$0x1] %v399
    %406 = vst [vmem:[#allocation9 + $0xe] sm:$0x1] %v404
    %v407 = vmul.f32 %v387, %v67
    %v408 = vadd.f32 %v407, %v69
    %v409 = vld [vmem:[#allocation5 + $0x1] sm:$0x1]
    %v410 = vadd.f32 %v408, %v409
    %v411 = vmax.f32 %v410, 0.0
    %v412 = vmul.f32 %v392, %v68
    %v413 = vadd.f32 %v412, %v70
    %v414 = vld [vmem:[#allocation5 + $0xe] sm:$0x1]
    %v415 = vadd.f32 %v413, %v414
    %v416 = vmax.f32 %v415, 0.0
    %417 = vst [vmem:[#allocation11 + $0x1] sm:$0x1] %v411
    %418 = vst [vmem:[#allocation12 + $0xe] sm:$0x1] %v416
    %v419 = vmul.f32 %v399, %v63
    %v420 = vadd.f32 %v419, %v65
    %v421 = vld [vmem:[#allocation2] sm:$0x1]
    %v422 = vadd.f32 %v420, %v421
    %v423 = vmax.f32 %v422, 0.0
    %v424 = vmul.f32 %v404, %v64
    %v425 = vadd.f32 %v424, %v66
    %v426 = vld [vmem:[#allocation2 + $0xf] sm:$0x1]
    %v427 = vadd.f32 %v425, %v426
    %v428 = vmax.f32 %v427, 0.0
    %429 = vst [vmem:[#allocation8] sm:$0x1] %v423
    %430 = vst [vmem:[#allocation9 + $0xf] sm:$0x1] %v428
    %v431 = vmul.f32 %v411, %v67
    %v432 = vadd.f32 %v431, %v69
    %v433 = vld [vmem:[#allocation5] sm:$0x1]
    %v434 = vadd.f32 %v432, %v433
    %v435 = vmax.f32 %v434, 0.0
    %v436 = vmul.f32 %v416, %v68
    %v437 = vadd.f32 %v436, %v70
    %v438 = vld [vmem:[#allocation5 + $0xf] sm:$0x1]
    %v439 = vadd.f32 %v437, %v438
    %v440 = vmax.f32 %v439, 0.0
    %441 = vst [vmem:[#allocation11] sm:$0x1] %v435
    %442 = vst [vmem:[#allocation12 + $0xf] sm:$0x1] %v440
    // Predicated region
    $region30: #{tpu_custom_call.1} parent=1 // pred_check
      _
    $region31: #{tpu_custom_call.1} parent=1 // pred_check_branch
      %444 = sbr.rel (0) target = $region33
    $region32: #{tpu_custom_call.1} parent=1 // pred_region
      %s446 = ssub.s32 256, 256
      %447 = vsyncadd [#allocation4], %s446
      %s448 = sshll.u32 [#allocation8], 4
      %s449 = int_to_ptr.vmem [resolvable:$true] %s448
      %454 = dma.vmem_to_hbm [thread:$0]  %s449, 256, %s4, [#allocation4], 128, 128, 8
    $region33: #{tpu_custom_call.1} parent=1 // pred_fallthru
      _
    // Predicated region
    $region34: #{tpu_custom_call.1} parent=1 // pred_check
      _
    $region35: #{tpu_custom_call.1} parent=1 // pred_check_branch
      %456 = sbr.rel (0) target = $region37
    $region36: #{tpu_custom_call.1} parent=1 // pred_region
      %s458 = ssub.s32 256, 256
      %459 = vsyncadd [#allocation10], %s458
      %s460 = sshll.u32 [#allocation9], 4
      %s461 = int_to_ptr.vmem [resolvable:$true] %s460
      %466 = dma.vmem_to_hbm [thread:$0]  %s461, 256, %s5, [#allocation10], 128, 128, 8
    $region37: #{tpu_custom_call.1} parent=1 // pred_fallthru
      _
    // Predicated region
    $region38: #{tpu_custom_call.1} parent=1 // pred_check
      _
    $region39: #{tpu_custom_call.1} parent=1 // pred_check_branch
      %468 = sbr.rel (0) target = $region41
    $region40: #{tpu_custom_call.1} parent=1 // pred_region
      %s470 = ssub.s32 256, 256
      %471 = vsyncadd [#allocation10], %s470
      %s472 = sshll.u32 [#allocation11], 4
      %s473 = int_to_ptr.vmem [resolvable:$true] %s472
      %478 = dma.vmem_to_hbm [thread:$0]  %s473, 256, %s6, [#allocation10], 128, 128, 8
    $region41: #{tpu_custom_call.1} parent=1 // pred_fallthru
      _
    // Predicated region
    $region42: #{tpu_custom_call.1} parent=1 // pred_check
      _
    $region43: #{tpu_custom_call.1} parent=1 // pred_check_branch
      %480 = sbr.rel (0) target = $region45
    $region44: #{tpu_custom_call.1} parent=1 // pred_region
      %s482 = ssub.s32 256, 256
      %483 = vsyncadd [#allocation13], %s482
      %s484 = sshll.u32 [#allocation12], 4
      %s485 = int_to_ptr.vmem [resolvable:$true] %s484
      %490 = dma.vmem_to_hbm [thread:$0]  %s485, 256, %s7, [#allocation13], 128, 128, 8
    $region45: #{tpu_custom_call.1} parent=1 // pred_fallthru
      _
    // Predicated region
    $region46: #{tpu_custom_call.1} parent=1 // pred_check
      _
    $region47: #{tpu_custom_call.1} parent=1 // pred_check_branch
      %492 = sbr.rel (0) target = $region49
    $region48: #{tpu_custom_call.1} parent=1 // pred_region
      %493 = dma.done [#allocation4], 256
    $region49: #{tpu_custom_call.1} parent=1 // pred_fallthru
      _
    // Predicated region
    $region50: #{tpu_custom_call.1} parent=1 // pred_check
      _
    $region51: #{tpu_custom_call.1} parent=1 // pred_check_branch
      %495 = sbr.rel (0) target = $region53
    $region52: #{tpu_custom_call.1} parent=1 // pred_region
      %496 = dma.done [#allocation10], 256
    $region53: #{tpu_custom_call.1} parent=1 // pred_fallthru
      _
    // Predicated region
    $region54: #{tpu_custom_call.1} parent=1 // pred_check
      _
    $region55: #{tpu_custom_call.1} parent=1 // pred_check_branch
      %498 = sbr.rel (0) target = $region57
    $region56: #{tpu_custom_call.1} parent=1 // pred_region
      %499 = dma.done [#allocation10], 256
    $region57: #{tpu_custom_call.1} parent=1 // pred_fallthru
      _
    // Predicated region
    $region58: #{tpu_custom_call.1} parent=1 // pred_check
      _
    $region59: #{tpu_custom_call.1} parent=1 // pred_check_branch
      %501 = sbr.rel (0) target = $region61
    $region60: #{tpu_custom_call.1} parent=1 // pred_region
      %502 = dma.done [#allocation13], 256
    $region61: #{tpu_custom_call.1} parent=1 // pred_fallthru
      _
    %503 = vsyncpa [#allocation3], 1
    %504 = vsyncpa [#allocation6], 1
    %505 = vsyncpa [#allocation4], 1
    %506 = vsyncpa [#allocation10], 1
    %507 = vsyncpa [#allocation13], 1

</llo_original>
